<compile_context>
chip_gen: v6e
topology: v6e:2x2x1
jax: 0.10.0
libtpu: 0.0.40
codegen_flags: <defaults>
</compile_context>

<pallas_src>
from functools import partial

import jax
import jax.numpy as jnp
from jax.experimental import pallas as pl
from jax.experimental.pallas import tpu as pltpu


_LANE_PAD = 128  # zero padding on each side of the flattened H*W (lane) axis


def _half_dslayer_kernel(x_ref, w1_ref, b1_ref, w2_ref, b2_ref, o_ref,
                         *, H, W, Cin, Cmid, B_tile):
    # x_ref : (B_tile, Cin, H*W)  bf16  unpadded image block
    # w1_ref: (Cmid, 9*Cin)       bf16  3x3 weights, tap-major columns
    # b1_ref: (Cmid, 1)  f32
    # w2_ref: (Cmid, 1)  f32
    # b2_ref: (1, 1)     f32
    # o_ref : (B_tile, 1, H*W) f32
    HW = H * W

    x = x_ref[...]                                           # (B, Cin, HW) bf16

    # Zero-pad the flattened spatial (lane) axis once: shifted taps that fall
    # outside the image in y read zeros "for free".
    zpad = jnp.zeros((B_tile, Cin, _LANE_PAD), dtype=x.dtype)
    xpad = jnp.concatenate([zpad, x, zpad], axis=-1)         # (B, Cin, HW+2P)

    # Column-validity masks (only the +-1 x-shifts can wrap across a row).
    lane = jax.lax.broadcasted_iota(jnp.int32, (1, 1, HW), 2)
    px = lane % W
    mask_left = px >= 1            # valid source column for ox = -1
    mask_right = px <= (W - 2)     # valid source column for ox = +1

    # Build the (B, 9*Cin, HW) patch: 9 shifted copies stacked along K.
    taps = []
    for dy in range(3):
        for dx in range(3):
            oy, ox = dy - 1, dx - 1
            start = _LANE_PAD + oy * W + ox
            win = jax.lax.slice(xpad, (0, 0, start),
                                (B_tile, Cin, start + HW))   # (B, Cin, HW)
            if ox == -1:
                win = jnp.where(mask_left, win, 0)
            elif ox == 1:
                win = jnp.where(mask_right, win, 0)
            taps.append(win)
    patch = jnp.concatenate(taps, axis=1)                    # (B, 9*Cin, HW) bf16

    # One K = 9*Cin MXU contraction per image; M = Cmid, N = HW (lane dense).
    w1 = w1_ref[...]                                         # (Cmid, 9*Cin) bf16
    accs = []
    for b in range(B_tile):
        acc_b = jnp.dot(w1, patch[b],
                        preferred_element_type=jnp.float32)  # (Cmid, HW) f32
        accs.append(acc_b.reshape(1, Cmid, HW))
    acc = jnp.concatenate(accs, axis=0)                      # (B, Cmid, HW) f32

    # Bias + ReLU in f32 (VPU).
    hid = jnp.maximum(acc + b1_ref[...][None], 0.0)          # (B, Cmid, HW)

    # 1x1 conv as broadcast multiply + sublane reduction (no 1-lane MXU pass).
    out = jnp.sum(hid * w2_ref[...][None], axis=1, keepdims=True)
    out = out + b2_ref[...][None]                            # (B, 1, HW)

    o_ref[...] = out.astype(o_ref.dtype)


def half_dslayer(x_nchw, w1, b1, w2, b2, *, b_tile=4):
    """Forward pass of half_DSLayer.

    x_nchw: (N, Cin, H, W) float32
    w1: (Cmid, Cin, 3, 3), b1: (Cmid,)   -- enlayer Conv2d(Cin, Cin//4, k=3, p=1)
    w2: (1, Cmid, 1, 1),   b2: (1,)      -- predlayer Conv2d(Cin//4, 1, k=1)
    returns (N, 1, H, W) float32
    """
    N, Cin, H, W = x_nchw.shape
    Cmid = w1.shape[0]
    HW = H * W
    while N % b_tile:   # keep the batch tiling exact
        b_tile -= 1

    # ---- glue (plain JAX): free reshape, bf16 cast, weight repack ----
    x_k = x_nchw.reshape(N, Cin, HW).astype(jnp.bfloat16)
    # (Cmid, Cin, 3, 3) -> (Cmid, 3, 3, Cin) -> (Cmid, 9*Cin) tap-major columns
    w1_k = jnp.transpose(w1, (0, 2, 3, 1)).reshape(Cmid, 9 * Cin).astype(jnp.bfloat16)
    b1_k = b1.reshape(Cmid, 1).astype(jnp.float32)
    w2_k = w2.reshape(Cmid, 1).astype(jnp.float32)
    b2_k = b2.reshape(1, 1).astype(jnp.float32)

    kernel = partial(_half_dslayer_kernel, H=H, W=W, Cin=Cin, Cmid=Cmid,
                     B_tile=b_tile)

    out_flat = pl.pallas_call(
        kernel,
        out_shape=jax.ShapeDtypeStruct((N, 1, HW), jnp.float32),
        grid_spec=pltpu.PrefetchScalarGridSpec(
            num_scalar_prefetch=0,
            grid=(N // b_tile,),
            in_specs=[
                pl.BlockSpec((b_tile, Cin, HW), lambda i: (i, 0, 0)),
                pl.BlockSpec((Cmid, 9 * Cin), lambda i: (0, 0)),
                pl.BlockSpec((Cmid, 1), lambda i: (0, 0)),
                pl.BlockSpec((Cmid, 1), lambda i: (0, 0)),
                pl.BlockSpec((1, 1), lambda i: (0, 0)),
            ],
            out_specs=pl.BlockSpec((b_tile, 1, HW), lambda i: (i, 0, 0)),
        ),
        compiler_params=pltpu.CompilerParams(
            dimension_semantics=("parallel",)),
    )(x_k, w1_k, b1_k, w2_k, b2_k)

    return out_flat.reshape(N, 1, H, W)


def _reference(x, w1, b1, w2, b2):
    # Reference on the same bf16-rounded activation/3x3-weight values the
    # kernel consumes (accumulation in f32), so tolerances stay tight.
    Cmid = w1.shape[0]
    xq = x.astype(jnp.bfloat16).astype(jnp.float32)
    w1q = w1.astype(jnp.bfloat16).astype(jnp.float32)
    y = jax.lax.conv_general_dilated(
        xq, w1q, window_strides=(1, 1), padding=((1, 1), (1, 1)),
        dimension_numbers=('NCHW', 'OIHW', 'NCHW'),
        precision=jax.lax.Precision.HIGHEST)
    y = jnp.maximum(y + b1.reshape(1, Cmid, 1, 1), 0.0)
    y = jax.lax.conv_general_dilated(
        y, w2, window_strides=(1, 1), padding=((0, 0), (0, 0)),
        dimension_numbers=('NCHW', 'OIHW', 'NCHW'),
        precision=jax.lax.Precision.HIGHEST)
    return y + b2.reshape(1, 1, 1, 1)


if __name__ == "__main__":
    key = jax.random.PRNGKey(0)
    k1, k2, k3, k4, k5 = jax.random.split(key, 5)

    # Small shapes consistent with the module: in_channel=16 -> mid=4.
    # N=8 with b_tile=4 gives a 2-step parallel grid (both v7x TCs busy).
    N, Cin, H, W = 8, 16, 16, 16
    Cmid = Cin // 4

    x = jax.random.normal(k1, (N, Cin, H, W), dtype=jnp.float32)
    w1 = jax.random.normal(k2, (Cmid, Cin, 3, 3), dtype=jnp.float32) * 0.1
    b1 = jax.random.normal(k3, (Cmid,), dtype=jnp.float32) * 0.1
    w2 = jax.random.normal(k4, (1, Cmid, 1, 1), dtype=jnp.float32) * 0.1
    b2 = jax.random.normal(k5, (1,), dtype=jnp.float32) * 0.1

    out = half_dslayer(x, w1, b1, w2, b2, b_tile=4)
    out = jax.block_until_ready(out)

    ref = _reference(x, w1, b1, w2, b2)
    assert out.shape == (N, 1, H, W), out.shape
    max_err = float(jnp.max(jnp.abs(out - ref)))
    assert jnp.allclose(out, ref, atol=5e-3, rtol=5e-3), max_err

    print("KERNEL_OK")
</pallas_src>

<mosaic_0001>
module attributes {stable_mosaic.version = 11 : i64} {
  func.func @_half_dslayer_kernel(%arg0: i32, %arg1: memref<4x16x256xbf16, #tpu.memory_space<vmem>>, %arg2: memref<4x144xbf16, #tpu.memory_space<vmem>>, %arg3: memref<4x1xf32, #tpu.memory_space<vmem>>, %arg4: memref<4x1xf32, #tpu.memory_space<vmem>>, %arg5: memref<1x1xf32, #tpu.memory_space<vmem>>, %arg6: memref<4x1x256xf32, #tpu.memory_space<vmem>>) attributes {dimension_semantics = [#tpu.dimension_semantics<parallel>], iteration_bounds = array<i64: 2>, scalar_prefetch = 0 : i64, scratch_operands = 0 : i64, tpu.core_type = #tpu.core_type<tc>, window_params = [{transform_indices = @transform_0, window_bounds = array<i64: 4, 16, 256>}, {pipeline_mode = #tpu.pipeline_mode<synchronous>, transform_indices = @transform_1, window_bounds = array<i64: 4, 144>}, {pipeline_mode = #tpu.pipeline_mode<synchronous>, transform_indices = @transform_2, window_bounds = array<i64: 4, 1>}, {pipeline_mode = #tpu.pipeline_mode<synchronous>, transform_indices = @transform_3, window_bounds = array<i64: 4, 1>}, {pipeline_mode = #tpu.pipeline_mode<synchronous>, transform_indices = @transform_4, window_bounds = array<i64: 1, 1>}, {transform_indices = @transform_5, window_bounds = array<i64: 4, 1, 256>}]} {
    %c0 = arith.constant 0 : index
    %c0_0 = arith.constant 0 : index
    %c0_1 = arith.constant 0 : index
    %0 = vector.load %arg1[%c0, %c0_0, %c0_1] : memref<4x16x256xbf16, #tpu.memory_space<vmem>>, vector<4x16x256xbf16>
    %cst = arith.constant 0.000000e+00 : bf16
    %1 = vector.broadcast %cst : bf16 to vector<4x16x128xbf16>
    %2 = tpu.concatenate %1, %0, %1 in 2 : vector<4x16x128xbf16>, vector<4x16x256xbf16>, vector<4x16x128xbf16> -> vector<4x16x512xbf16>
    %3 = tpu.iota {dimensions = array<i32: 2>} : vector<1x1x256xi32>
    %c16_i32 = arith.constant 16 : i32
    %c0_i32 = arith.constant 0 : i32
    %4 = arith.cmpi eq, %c16_i32, %c0_i32 : i32
    %c1_i32 = arith.constant 1 : i32
    %5 = arith.select %4, %c1_i32, %c16_i32 : i32
    %6 = vector.broadcast %5 : i32 to vector<1x1x256xi32>
    %7 = arith.remsi %3, %6 : vector<1x1x256xi32>
    %c0_i32_2 = arith.constant 0 : i32
    %8 = vector.broadcast %c0_i32_2 : i32 to vector<1x1x256xi32>
    %9 = arith.cmpi ne, %7, %8 : vector<1x1x256xi32>
    %c0_i32_3 = arith.constant 0 : i32
    %10 = vector.broadcast %c0_i32_3 : i32 to vector<1x1x256xi32>
    %11 = arith.cmpi slt, %7, %10 : vector<1x1x256xi32>
    %c0_i32_4 = arith.constant 0 : i32
    %12 = arith.cmpi slt, %5, %c0_i32_4 : i32
    %13 = vector.broadcast %12 : i1 to vector<1x1x256xi1>
    %14 = vector.broadcast %13 : vector<1x1x256xi1> to vector<1x1x256xi1>
    %15 = arith.xori %11, %14 : vector<1x1x256xi1>
    %16 = arith.andi %15, %9 : vector<1x1x256xi1>
    %17 = vector.broadcast %5 : i32 to vector<1x1x256xi32>
    %18 = arith.addi %7, %17 : vector<1x1x256xi32>
    %19 = arith.select %16, %18, %7 : vector<1x1x256xi1>, vector<1x1x256xi32>
    %c1_i32_5 = arith.constant 1 : i32
    %20 = vector.broadcast %c1_i32_5 : i32 to vector<1x1x256xi32>
    %21 = arith.cmpi sge, %19, %20 : vector<1x1x256xi32>
    %c14_i32 = arith.constant 14 : i32
    %22 = vector.broadcast %c14_i32 : i32 to vector<1x1x256xi32>
    %23 = arith.cmpi sle, %19, %22 : vector<1x1x256xi32>
    %24 = vector.extract_strided_slice %2 {offsets = [0, 0, 111], sizes = [4, 16, 256], strides = [1, 1, 1]} : vector<4x16x512xbf16> to vector<4x16x256xbf16>
    %c0_i32_6 = arith.constant 0 : i32
    %25 = arith.sitofp %c0_i32_6 : i32 to bf16
    %26 = vector.shape_cast %21 : vector<1x1x256xi1> to vector<1x1x256xi1>
    %27 = vector.broadcast %26 : vector<1x1x256xi1> to vector<4x16x256xi1>
    %28 = vector.broadcast %25 : bf16 to vector<4x16x256xbf16>
    %29 = arith.select %27, %24, %28 : vector<4x16x256xi1>, vector<4x16x256xbf16>
    %30 = vector.extract_strided_slice %2 {offsets = [0, 0, 112], sizes = [4, 16, 256], strides = [1, 1, 1]} : vector<4x16x512xbf16> to vector<4x16x256xbf16>
    %31 = vector.extract_strided_slice %2 {offsets = [0, 0, 113], sizes = [4, 16, 256], strides = [1, 1, 1]} : vector<4x16x512xbf16> to vector<4x16x256xbf16>
    %c0_i32_7 = arith.constant 0 : i32
    %32 = arith.sitofp %c0_i32_7 : i32 to bf16
    %33 = vector.shape_cast %23 : vector<1x1x256xi1> to vector<1x1x256xi1>
    %34 = vector.broadcast %33 : vector<1x1x256xi1> to vector<4x16x256xi1>
    %35 = vector.broadcast %32 : bf16 to vector<4x16x256xbf16>
    %36 = arith.select %34, %31, %35 : vector<4x16x256xi1>, vector<4x16x256xbf16>
    %37 = vector.extract_strided_slice %2 {offsets = [0, 0, 127], sizes = [4, 16, 256], strides = [1, 1, 1]} : vector<4x16x512xbf16> to vector<4x16x256xbf16>
    %c0_i32_8 = arith.constant 0 : i32
    %38 = arith.sitofp %c0_i32_8 : i32 to bf16
    %39 = vector.shape_cast %21 : vector<1x1x256xi1> to vector<1x1x256xi1>
    %40 = vector.broadcast %39 : vector<1x1x256xi1> to vector<4x16x256xi1>
    %41 = vector.broadcast %38 : bf16 to vector<4x16x256xbf16>
    %42 = arith.select %40, %37, %41 : vector<4x16x256xi1>, vector<4x16x256xbf16>
    %43 = vector.extract_strided_slice %2 {offsets = [0, 0, 128], sizes = [4, 16, 256], strides = [1, 1, 1]} : vector<4x16x512xbf16> to vector<4x16x256xbf16>
    %44 = vector.extract_strided_slice %2 {offsets = [0, 0, 129], sizes = [4, 16, 256], strides = [1, 1, 1]} : vector<4x16x512xbf16> to vector<4x16x256xbf16>
    %c0_i32_9 = arith.constant 0 : i32
    %45 = arith.sitofp %c0_i32_9 : i32 to bf16
    %46 = vector.shape_cast %23 : vector<1x1x256xi1> to vector<1x1x256xi1>
    %47 = vector.broadcast %46 : vector<1x1x256xi1> to vector<4x16x256xi1>
    %48 = vector.broadcast %45 : bf16 to vector<4x16x256xbf16>
    %49 = arith.select %47, %44, %48 : vector<4x16x256xi1>, vector<4x16x256xbf16>
    %50 = vector.extract_strided_slice %2 {offsets = [0, 0, 143], sizes = [4, 16, 256], strides = [1, 1, 1]} : vector<4x16x512xbf16> to vector<4x16x256xbf16>
    %c0_i32_10 = arith.constant 0 : i32
    %51 = arith.sitofp %c0_i32_10 : i32 to bf16
    %52 = vector.shape_cast %21 : vector<1x1x256xi1> to vector<1x1x256xi1>
    %53 = vector.broadcast %52 : vector<1x1x256xi1> to vector<4x16x256xi1>
    %54 = vector.broadcast %51 : bf16 to vector<4x16x256xbf16>
    %55 = arith.select %53, %50, %54 : vector<4x16x256xi1>, vector<4x16x256xbf16>
    %56 = vector.extract_strided_slice %2 {offsets = [0, 0, 144], sizes = [4, 16, 256], strides = [1, 1, 1]} : vector<4x16x512xbf16> to vector<4x16x256xbf16>
    %57 = vector.extract_strided_slice %2 {offsets = [0, 0, 145], sizes = [4, 16, 256], strides = [1, 1, 1]} : vector<4x16x512xbf16> to vector<4x16x256xbf16>
    %c0_i32_11 = arith.constant 0 : i32
    %58 = arith.sitofp %c0_i32_11 : i32 to bf16
    %59 = vector.shape_cast %23 : vector<1x1x256xi1> to vector<1x1x256xi1>
    %60 = vector.broadcast %59 : vector<1x1x256xi1> to vector<4x16x256xi1>
    %61 = vector.broadcast %58 : bf16 to vector<4x16x256xbf16>
    %62 = arith.select %60, %57, %61 : vector<4x16x256xi1>, vector<4x16x256xbf16>
    %63 = tpu.concatenate %29, %30, %36, %42, %43, %49, %55, %56, %62 in 1 : vector<4x16x256xbf16>, vector<4x16x256xbf16>, vector<4x16x256xbf16>, vector<4x16x256xbf16>, vector<4x16x256xbf16>, vector<4x16x256xbf16>, vector<4x16x256xbf16>, vector<4x16x256xbf16>, vector<4x16x256xbf16> -> vector<4x144x256xbf16>
    %c0_12 = arith.constant 0 : index
    %c0_13 = arith.constant 0 : index
    %64 = vector.load %arg2[%c0_12, %c0_13] : memref<4x144xbf16, #tpu.memory_space<vmem>>, vector<4x144xbf16>
    %65 = vector.extract_strided_slice %63 {offsets = [0, 0, 0], sizes = [1, 144, 256], strides = [1, 1, 1]} : vector<4x144x256xbf16> to vector<1x144x256xbf16>
    %66 = vector.shape_cast %65 : vector<1x144x256xbf16> to vector<144x256xbf16>
    %cst_14 = arith.constant dense<0.000000e+00> : vector<4x256xf32>
    %67 = tpu.matmul %64, %66, %cst_14 {dimension_numbers = #tpu.dot_dimension_numbers<[1], [0], [0], [1], [0, 0, 1, 1], [], []>} : vector<4x144xbf16>, vector<144x256xbf16>, vector<4x256xf32> -> vector<4x256xf32>
    %68 = vector.shape_cast %67 : vector<4x256xf32> to vector<1x4x256xf32>
    %69 = vector.extract_strided_slice %63 {offsets = [1, 0, 0], sizes = [1, 144, 256], strides = [1, 1, 1]} : vector<4x144x256xbf16> to vector<1x144x256xbf16>
    %70 = vector.shape_cast %69 : vector<1x144x256xbf16> to vector<144x256xbf16>
    %cst_15 = arith.constant dense<0.000000e+00> : vector<4x256xf32>
    %71 = tpu.matmul %64, %70, %cst_15 {dimension_numbers = #tpu.dot_dimension_numbers<[1], [0], [0], [1], [0, 0, 1, 1], [], []>} : vector<4x144xbf16>, vector<144x256xbf16>, vector<4x256xf32> -> vector<4x256xf32>
    %72 = vector.shape_cast %71 : vector<4x256xf32> to vector<1x4x256xf32>
    %73 = vector.extract_strided_slice %63 {offsets = [2, 0, 0], sizes = [1, 144, 256], strides = [1, 1, 1]} : vector<4x144x256xbf16> to vector<1x144x256xbf16>
    %74 = vector.shape_cast %73 : vector<1x144x256xbf16> to vector<144x256xbf16>
    %cst_16 = arith.constant dense<0.000000e+00> : vector<4x256xf32>
    %75 = tpu.matmul %64, %74, %cst_16 {dimension_numbers = #tpu.dot_dimension_numbers<[1], [0], [0], [1], [0, 0, 1, 1], [], []>} : vector<4x144xbf16>, vector<144x256xbf16>, vector<4x256xf32> -> vector<4x256xf32>
    %76 = vector.shape_cast %75 : vector<4x256xf32> to vector<1x4x256xf32>
    %77 = vector.extract_strided_slice %63 {offsets = [3, 0, 0], sizes = [1, 144, 256], strides = [1, 1, 1]} : vector<4x144x256xbf16> to vector<1x144x256xbf16>
    %78 = vector.shape_cast %77 : vector<1x144x256xbf16> to vector<144x256xbf16>
    %cst_17 = arith.constant dense<0.000000e+00> : vector<4x256xf32>
    %79 = tpu.matmul %64, %78, %cst_17 {dimension_numbers = #tpu.dot_dimension_numbers<[1], [0], [0], [1], [0, 0, 1, 1], [], []>} : vector<4x144xbf16>, vector<144x256xbf16>, vector<4x256xf32> -> vector<4x256xf32>
    %80 = vector.shape_cast %79 : vector<4x256xf32> to vector<1x4x256xf32>
    %81 = tpu.concatenate %68, %72, %76, %80 in 0 : vector<1x4x256xf32>, vector<1x4x256xf32>, vector<1x4x256xf32>, vector<1x4x256xf32> -> vector<4x4x256xf32>
    %c0_18 = arith.constant 0 : index
    %c0_19 = arith.constant 0 : index
    %82 = vector.load %arg3[%c0_18, %c0_19] : memref<4x1xf32, #tpu.memory_space<vmem>>, vector<4x1xf32>
    %83 = vector.shape_cast %82 : vector<4x1xf32> to vector<1x4x1xf32>
    %84 = vector.broadcast %83 : vector<1x4x1xf32> to vector<4x4x256xf32>
    %85 = arith.addf %81, %84 : vector<4x4x256xf32>
    %cst_20 = arith.constant 0.000000e+00 : f32
    %86 = vector.broadcast %cst_20 : f32 to vector<4x4x256xf32>
    %87 = arith.maximumf %85, %86 : vector<4x4x256xf32>
    %c0_21 = arith.constant 0 : index
    %c0_22 = arith.constant 0 : index
    %88 = vector.load %arg4[%c0_21, %c0_22] : memref<4x1xf32, #tpu.memory_space<vmem>>, vector<4x1xf32>
    %89 = vector.shape_cast %88 : vector<4x1xf32> to vector<1x4x1xf32>
    %90 = vector.broadcast %89 : vector<1x4x1xf32> to vector<4x4x256xf32>
    %91 = arith.mulf %87, %90 : vector<4x4x256xf32>
    %cst_23 = arith.constant dense<0.000000e+00> : vector<4x256xf32>
    %92 = vector.multi_reduction <add>, %91, %cst_23 [1] : vector<4x4x256xf32> to vector<4x256xf32>
    %93 = vector.shape_cast %92 : vector<4x256xf32> to vector<4x1x256xf32>
    %c0_24 = arith.constant 0 : index
    %c0_25 = arith.constant 0 : index
    %94 = vector.load %arg5[%c0_24, %c0_25] : memref<1x1xf32, #tpu.memory_space<vmem>>, vector<1x1xf32>
    %95 = vector.shape_cast %94 : vector<1x1xf32> to vector<1x1x1xf32>
    %96 = vector.broadcast %95 : vector<1x1x1xf32> to vector<4x1x256xf32>
    %97 = arith.addf %93, %96 : vector<4x1x256xf32>
    %c0_26 = arith.constant 0 : index
    %c0_27 = arith.constant 0 : index
    %c0_28 = arith.constant 0 : index
    %98 = vector.load %arg6[%c0_26, %c0_27, %c0_28] : memref<4x1x256xf32, #tpu.memory_space<vmem>>, vector<4x1x256xf32>
    tpu.vector_store %arg6[%c0_26, %c0_27, %c0_28], %97 {strides = array<i32>} : memref<4x1x256xf32, #tpu.memory_space<vmem>>, vector<4x1x256xf32>,
    return
  }
  func.func @transform_0(%arg0: i32) -> (i32, i32, i32) {
    %c0_i32 = arith.constant 0 : i32
    %c0_i32_0 = arith.constant 0 : i32
    %c0_i32_1 = arith.constant 0 : i32
    return %arg0, %c0_i32, %c0_i32_0 : i32, i32, i32
  }
  func.func @transform_1(%arg0: i32) -> (i32, i32) {
    %c0_i32 = arith.constant 0 : i32
    %c0_i32_0 = arith.constant 0 : i32
    %c0_i32_1 = arith.constant 0 : i32
    return %c0_i32, %c0_i32_0 : i32, i32
  }
  func.func @transform_2(%arg0: i32) -> (i32, i32) {
    %c0_i32 = arith.constant 0 : i32
    %c0_i32_0 = arith.constant 0 : i32
    %c0_i32_1 = arith.constant 0 : i32
    return %c0_i32, %c0_i32_0 : i32, i32
  }
  func.func @transform_3(%arg0: i32) -> (i32, i32) {
    %c0_i32 = arith.constant 0 : i32
    %c0_i32_0 = arith.constant 0 : i32
    %c0_i32_1 = arith.constant 0 : i32
    return %c0_i32, %c0_i32_0 : i32, i32
  }
  func.func @transform_4(%arg0: i32) -> (i32, i32) {
    %c0_i32 = arith.constant 0 : i32
    %c0_i32_0 = arith.constant 0 : i32
    %c0_i32_1 = arith.constant 0 : i32
    return %c0_i32, %c0_i32_0 : i32, i32
  }
  func.func @transform_5(%arg0: i32) -> (i32, i32, i32) {
    %c0_i32 = arith.constant 0 : i32
    %c0_i32_0 = arith.constant 0 : i32
    %c0_i32_1 = arith.constant 0 : i32
    return %arg0, %c0_i32, %c0_i32_0 : i32, i32, i32
  }
}

</mosaic_0001>

<llo_original>
// kernel: tpu_custom_call.1
$region0: #{tpu_custom_call.1}
  #allocation0 [shape = 'u32[]', space=smem, size = 0x4, offset = 0x4, fixed_abs, tag = 'smem constant byte address 0x4 - core index']
  #allocation1 [shape = 'u32[144,128]{1,0:T(1,128)}', space=vmem, size = 0x12000, scoped, tag = 'internal scratch']
  #allocation2 [shape = 'f32[1,1]{1,0:T(1,128)S(1)}', space=vmem, size = 0x200, scoped, tag = 'scoped memory for tpu_custom_call.1']
  %s0 = inlined_call_operand.hbm [shape: bf16[8,16,256], index: 0, kind: input, shape index: {}]
  %s1 = inlined_call_operand.vmem [shape: bf16[4,144], index: 1, kind: input, shape index: {}]
  %s2 = inlined_call_operand.vmem [shape: f32[4,1], index: 2, kind: input, shape index: {}]
  %s3 = inlined_call_operand.vmem [shape: f32[4,1], index: 3, kind: input, shape index: {}]
  %s4 = inlined_call_operand.<no memory space> [shape: f32[1,1], index: 4, kind: input, shape index: {}]
  %s5 = inlined_call_operand.hbm [shape: f32[8,1,256], index: 5, kind: output, shape index: {}]
  %s6 = sld [smem:[#allocation0]]
  $region57: #{tpu_custom_call.1} parent=0
    _
  %s8 = ssub.s32 1, %s6
  %s9 = scalar_select 0, %s8, %s6
  %v10 = vstv %s4
  %11 = vst [vmem:[#allocation2] sm:$0x1] %v10
  $region1: #{tpu_custom_call.1} parent=0
    #allocation3 [shape = 'u8[65536]{0}', space=vmem, size = 0x10000, scoped, tag = 'input window, operand 0']
    #allocation4 [shape = 's32[2]{0}', space=sflag, size = 0x8, scoped, tag = 'scoped memory for tpu_custom_call.1']
    #allocation5 [shape = 's32[2]{0}', space=sflag, size = 0x8, scoped, tag = 'scoped memory for tpu_custom_call.1']
    #allocation6 [shape = 'u8[8192]{0}', space=vmem, size = 0x2000, scoped, tag = 'output window, operand 0']
    %12 = vsyncpa [#allocation4], 0
    %s13 = scalar_lea.sflag [#allocation4], 1
    %14 = vsyncpa %s13, 0
    %15 = vsyncpa [#allocation5], 0
    %s16 = scalar_lea.sflag [#allocation5], 1
    %17 = vsyncpa %s16, 0
    loop: start=0, step=1, limit=4
    $region2: #{tpu_custom_call.1} parent=1 // loop_pre_header
      _
    $region3: #{tpu_custom_call.1} parent=1 // loop_header
      %s19 = sphi 0, %s23
      %p20 = scmp.ge.s32.totalorder %s19, 4
      %s29 = sphi 0, %s31
      %s32 = sphi 0, %s29
      %s33 = sphi 0, %s32
      %s49 = sphi 0, %s33
      %s53 = sphi 0, %s53
      %s55 = sphi 0, %s53
      %s56 = sphi 0, %s55
      %s70 = sphi 0, %s56
      %s74 = sphi 0, %s74
      %s76 = sphi 0, %s74
      %s77 = sphi 0, %s76
      %s91 = sphi 0, %s77
      %s95 = sphi 0, %s95
      %s97 = sphi 0, %s95
      %s98 = sphi 0, %s97
      %s112 = sphi 0, %s98
      %s116 = sphi 0, %s116
      %s118 = sphi 0, %s116
      %s119 = sphi 0, %s118
      %s133 = sphi 0, %s119
      %s139 = sphi 0, %s141
      %s142 = sphi 0, %s139
      %s143 = sphi 0, %s142
      %s159 = sphi 0, %s143
    $region4: #{tpu_custom_call.1} parent=1 // loop_header_branch
      %22 = sbr.rel (%p20) target = $region8
    $region5: #{tpu_custom_call.1} parent=1 // loop_body
      %s24 = ssub.s32 %s19, 1
      %s25 = ssub.s32 %s19, 2
      %s26 = sadd.s32 %s19, 1
      %s27 = ssub.s32 %s19, %s26
      %p28 = scmp.eq.s32.totalorder %s27, 0
      %s30 = sadd.s32 %s29, 1
      %s31 = scalar_select %p28, %s29, %s30
      %p34 = pneg %p28
      %p35 = scmp.eq.s32.totalorder %s19, 1
      %p36 = por %p34, %p35
      %p37 = scmp.ne.s32.totalorder %s29, %s32
      %p38 = scmp.eq.s32.totalorder %s19, 0
      %p39 = por %p37, %p38
      %p40 = scmp.ne.s32.totalorder %s29, %s32
      %p41 = scmp.eq.s32.totalorder %s24, 1
      %p42 = por %p40, %p41
      %p43 = scmp.ne.s32.totalorder %s32, %s33
      %p44 = scmp.eq.s32.totalorder %s24, 0
      %p45 = por %p43, %p44
      %p46 = scmp.ne.s32.totalorder %s32, %s33
      %p47 = scmp.eq.s32.totalorder %s25, 1
      %p48 = por %p46, %p47
      %p50 = scmp.ne.s32.totalorder %s33, %s49
      %p51 = scmp.eq.s32.totalorder %s25, 0
      %p52 = por %p50, %p51
      %s54 = sadd.s32 %s53, 1
      %p57 = scmp.eq.s32.totalorder %s19, 1
      %p58 = scmp.ne.s32.totalorder %s53, %s55
      %p59 = scmp.eq.s32.totalorder %s19, 0
      %p60 = por %p58, %p59
      %p61 = scmp.ne.s32.totalorder %s53, %s55
      %p62 = scmp.eq.s32.totalorder %s24, 1
      %p63 = por %p61, %p62
      %p64 = scmp.ne.s32.totalorder %s55, %s56
      %p65 = scmp.eq.s32.totalorder %s24, 0
      %p66 = por %p64, %p65
      %p67 = scmp.ne.s32.totalorder %s55, %s56
      %p68 = scmp.eq.s32.totalorder %s25, 1
      %p69 = por %p67, %p68
      %p71 = scmp.ne.s32.totalorder %s56, %s70
      %p72 = scmp.eq.s32.totalorder %s25, 0
      %p73 = por %p71, %p72
      %s75 = sadd.s32 %s74, 1
      %p78 = scmp.eq.s32.totalorder %s19, 1
      %p79 = scmp.ne.s32.totalorder %s74, %s76
      %p80 = scmp.eq.s32.totalorder %s19, 0
      %p81 = por %p79, %p80
      %p82 = scmp.ne.s32.totalorder %s74, %s76
      %p83 = scmp.eq.s32.totalorder %s24, 1
      %p84 = por %p82, %p83
      %p85 = scmp.ne.s32.totalorder %s76, %s77
      %p86 = scmp.eq.s32.totalorder %s24, 0
      %p87 = por %p85, %p86
      %p88 = scmp.ne.s32.totalorder %s76, %s77
      %p89 = scmp.eq.s32.totalorder %s25, 1
      %p90 = por %p88, %p89
      %p92 = scmp.ne.s32.totalorder %s77, %s91
      %p93 = scmp.eq.s32.totalorder %s25, 0
      %p94 = por %p92, %p93
      %s96 = sadd.s32 %s95, 1
      %p99 = scmp.eq.s32.totalorder %s19, 1
      %p100 = scmp.ne.s32.totalorder %s95, %s97
      %p101 = scmp.eq.s32.totalorder %s19, 0
      %p102 = por %p100, %p101
      %p103 = scmp.ne.s32.totalorder %s95, %s97
      %p104 = scmp.eq.s32.totalorder %s24, 1
      %p105 = por %p103, %p104
      %p106 = scmp.ne.s32.totalorder %s97, %s98
      %p107 = scmp.eq.s32.totalorder %s24, 0
      %p108 = por %p106, %p107
      %p109 = scmp.ne.s32.totalorder %s97, %s98
      %p110 = scmp.eq.s32.totalorder %s25, 1
      %p111 = por %p109, %p110
      %p113 = scmp.ne.s32.totalorder %s98, %s112
      %p114 = scmp.eq.s32.totalorder %s25, 0
      %p115 = por %p113, %p114
      %s117 = sadd.s32 %s116, 1
      %p120 = scmp.eq.s32.totalorder %s19, 1
      %p121 = scmp.ne.s32.totalorder %s116, %s118
      %p122 = scmp.eq.s32.totalorder %s19, 0
      %p123 = por %p121, %p122
      %p124 = scmp.ne.s32.totalorder %s116, %s118
      %p125 = scmp.eq.s32.totalorder %s24, 1
      %p126 = por %p124, %p125
      %p127 = scmp.ne.s32.totalorder %s118, %s119
      %p128 = scmp.eq.s32.totalorder %s24, 0
      %p129 = por %p127, %p128
      %p130 = scmp.ne.s32.totalorder %s118, %s119
      %p131 = scmp.eq.s32.totalorder %s25, 1
      %p132 = por %p130, %p131
      %p134 = scmp.ne.s32.totalorder %s119, %s133
      %p135 = scmp.eq.s32.totalorder %s25, 0
      %p136 = por %p134, %p135
      %s137 = ssub.s32 %s19, %s26
      %p138 = scmp.eq.s32.totalorder %s137, 0
      %s140 = sadd.s32 %s139, 1
      %s141 = scalar_select %p138, %s139, %s140
      %p144 = pneg %p138
      %p145 = scmp.eq.s32.totalorder %s19, 1
      %p146 = por %p144, %p145
      %p147 = scmp.ne.s32.totalorder %s139, %s142
      %p148 = scmp.eq.s32.totalorder %s19, 0
      %p149 = por %p147, %p148
      %p150 = scmp.ne.s32.totalorder %s139, %s142
      %p151 = scmp.eq.s32.totalorder %s24, 1
      %p152 = por %p150, %p151
      %p153 = scmp.ne.s32.totalorder %s142, %s143
      %p154 = scmp.eq.s32.totalorder %s24, 0
      %p155 = por %p153, %p154
      %p156 = scmp.ne.s32.totalorder %s142, %s143
      %p157 = scmp.eq.s32.totalorder %s25, 1
      %p158 = por %p156, %p157
      %p160 = scmp.ne.s32.totalorder %s143, %s159
      %p161 = scmp.eq.s32.totalorder %s25, 0
      %p162 = por %p160, %p161
      %p163 = scmp.le.s32.totalorder 1, %s19
      %p164 = scmp.lt.s32.totalorder %s19, 3
      %p165 = pnand %p163, %p164
      %p166 = pneg %p165
      // Predicated region
      $region9: #{tpu_custom_call.1} parent=5 // pred_check
        _
      $region10: #{tpu_custom_call.1} parent=5 // pred_check_branch
        %168 = sbr.rel (%p165) target = $region12
      $region11: #{tpu_custom_call.1} parent=5 // pred_region
        %s169 = ssub.s32 %s19, 1
        // Predicated region
        $region13: #{tpu_custom_call.1} parent=11 // pred_check
          %p170 = pneg %p66
        $region14: #{tpu_custom_call.1} parent=11 // pred_check_branch
          %172 = sbr.rel (%p170) target = $region16
        $region15: #{tpu_custom_call.1} parent=11 // pred_region
          _
        $region16: #{tpu_custom_call.1} parent=11 // pred_fallthru
          _
        // Predicated region
        $region17: #{tpu_custom_call.1} parent=11 // pred_check
          %p173 = pneg %p87
        $region18: #{tpu_custom_call.1} parent=11 // pred_check_branch
          %175 = sbr.rel (%p173) target = $region20
        $region19: #{tpu_custom_call.1} parent=11 // pred_region
          _
        $region20: #{tpu_custom_call.1} parent=11 // pred_fallthru
          _
        // Predicated region
        $region21: #{tpu_custom_call.1} parent=11 // pred_check
          %p176 = pneg %p108
        $region22: #{tpu_custom_call.1} parent=11 // pred_check_branch
          %178 = sbr.rel (%p176) target = $region24
        $region23: #{tpu_custom_call.1} parent=11 // pred_region
          _
        $region24: #{tpu_custom_call.1} parent=11 // pred_fallthru
          _
        // Predicated region
        $region25: #{tpu_custom_call.1} parent=11 // pred_check
          %p179 = pneg %p129
        $region26: #{tpu_custom_call.1} parent=11 // pred_check_branch
          %181 = sbr.rel (%p179) target = $region28
        $region27: #{tpu_custom_call.1} parent=11 // pred_region
          _
        $region28: #{tpu_custom_call.1} parent=11 // pred_fallthru
          _
      $region12: #{tpu_custom_call.1} parent=5 // pred_fallthru
        _
      %p182 = scmp.lt.s32.totalorder %s19, 2
      // Predicated region
      $region29: #{tpu_custom_call.1} parent=5 // pred_check
        %p183 = pneg %p182
      $region30: #{tpu_custom_call.1} parent=5 // pred_check_branch
        %185 = sbr.rel (%p183) target = $region32
      $region31: #{tpu_custom_call.1} parent=5 // pred_region
        // Predicated region
        $region33: #{tpu_custom_call.1} parent=31 // pred_check
          %p186 = pneg %p39
        $region34: #{tpu_custom_call.1} parent=31 // pred_check_branch
          %188 = sbr.rel (%p186) target = $region36
        $region35: #{tpu_custom_call.1} parent=31 // pred_region
          %s189 = sand.u32 %s29, 1
          %s190 = scalar_lea.sflag [#allocation4], %s189
          %s191 = sand.u32 %s29, 1
          %s192 = smul.addr %s191, 64
          %s193 = scalar_lea.vmem [#allocation3], %s192
          %s194 = smul.u32 4, %s19
          %s196 = ssub.s32 1024, 1024
          %197 = vsyncadd %s190, %s196
          %s198 = smul.addr %s194, 4
          %s199 = smul.addr %s198, 64
          %s200 = scalar_lea.hbm %s0, %s199
          %s201 = sshll.u32 %s193, 4
          %s202 = int_to_ptr.vmem [resolvable:$true] %s201
          %207 = dma.hbm_to_vmem [thread:$0]  %s200, 1024, %s202, %s190, 128, 128, 8
        $region36: #{tpu_custom_call.1} parent=31 // pred_fallthru
          _
      $region32: #{tpu_custom_call.1} parent=5 // pred_fallthru
        _
      %p208 = scmp.le.s32.totalorder 1, %s19
      %p209 = scmp.lt.s32.totalorder %s19, 3
      %p210 = pnand %p208, %p209
      %p211 = pneg %p210
      // Predicated region
      $region37: #{tpu_custom_call.1} parent=5 // pred_check
        _
      $region38: #{tpu_custom_call.1} parent=5 // pred_check_branch
        %213 = sbr.rel (%p210) target = $region40
      $region39: #{tpu_custom_call.1} parent=5 // pred_region
        %s214 = ssub.s32 %s19, 1
        %s215 = sand.u32 %s32, 1
        %s216 = scalar_lea.sflag [#allocation4], %s215
        %s217 = sand.u32 %s32, 1
        %s218 = smul.addr %s217, 64
        %s219 = scalar_lea.vmem [#allocation3], %s218
        // Predicated region
        $region41: #{tpu_custom_call.1} parent=39 // pred_check
          %p220 = pneg %p45
        $region42: #{tpu_custom_call.1} parent=39 // pred_check_branch
          %222 = sbr.rel (%p220) target = $region44
        $region43: #{tpu_custom_call.1} parent=39 // pred_region
          %223 = dma.done %s216, 1024
        $region44: #{tpu_custom_call.1} parent=39 // pred_fallthru
          _
        %s224 = sand.u32 %s32, 1
        %s225 = scalar_lea.sflag [#allocation4], %s224
        %s226 = sand.u32 %s32, 1
        %s227 = smul.addr %s226, 64
        %s228 = scalar_lea.vmem [#allocation3], %s227
        %p229 = pneg %p45
        %p230 = pneg %p42
        %p231 = pneg %p66
        %p232 = pneg %p63
        %p233 = pneg %p87
        %p234 = pneg %p84
        %p235 = pneg %p108
        %p236 = pneg %p105
        %p237 = pneg %p129
        %p238 = pneg %p126
        %p239 = pneg %p155
        %p240 = pneg %p152
        %s241 = sand.u32 %s142, 1
        %s242 = scalar_lea.sflag [#allocation5], %s241
        %s243 = sand.u32 %s142, 1
        %s244 = smul.addr %s243, 8
        %s245 = scalar_lea.vmem [#allocation6], %s244
        %s246 = smul.u32 4, %s24
        %s247 = smul.u32 4, %s24
        %v251 = vld [vmem:[%s219] sm:$0xff]
        %v252 = vld [vmem:[%s219 + $0x8] sm:$0xff]
        %v253 = vld [vmem:[%s219 + $0x10] sm:$0xff]
        %v254 = vld [vmem:[%s219 + $0x18] sm:$0xff]
        %v255 = vld [vmem:[%s219 + $0x20] sm:$0xff]
        %v256 = vld [vmem:[%s219 + $0x28] sm:$0xff]
        %v257 = vld [vmem:[%s219 + $0x30] sm:$0xff]
        %v258 = vld [vmem:[%s219 + $0x38] sm:$0xff]
        %v267 = vunpack.c.l.b16 %v251
        %v268 = vunpack.c.h.b16 %v251
        %v269 = vunpack.c.l.b16 %v252
        %v270 = vunpack.c.h.b16 %v252
        %v271 = vunpack.c.l.b16 %v253
        %v272 = vunpack.c.h.b16 %v253
        %v273 = vunpack.c.l.b16 %v254
        %v274 = vunpack.c.h.b16 %v254
        %v275 = vunpack.c.l.b16 %v255
        %v276 = vunpack.c.h.b16 %v255
        %v277 = vunpack.c.l.b16 %v256
        %v278 = vunpack.c.h.b16 %v256
        %v279 = vunpack.c.l.b16 %v257
        %v280 = vunpack.c.h.b16 %v257
        %v281 = vunpack.c.l.b16 %v258
        %v282 = vunpack.c.h.b16 %v258
        %v283 = vpack.c.b16 %v269, %v267
        %v284 = vpack.c.b16 %v270, %v268
        %v285 = vpack.c.b16 %v273, %v271
        %v286 = vpack.c.b16 %v274, %v272
        %v287 = vpack.c.b16 %v277, %v275
        %v288 = vpack.c.b16 %v278, %v276
        %v289 = vpack.c.b16 %v281, %v279
        %v290 = vpack.c.b16 %v282, %v280
        %v299 = vlaneseq
        %v300 = vand.u32 %v299, 127
        %v301 = vadd.s32 %v300, 128
        %vm302 = vcmp.lt.s32.totalorder %v300, 0
        %v303 = vsub.s32 0, %v300
        %v304 = vsel %vm302, %v303, %v300
        %v305 = vshrl.u32 %v304, 4
        %v306 = vand.u32 %v304, 15
        %v307 = vsub.s32 0, %v306
        %v308 = vsel %vm302, %v307, %v306
        %vm309 = vcmp.lt.s32.totalorder %v301, 0
        %v310 = vsub.s32 0, %v301
        %v311 = vsel %vm309, %v310, %v301
        %v312 = vshrl.u32 %v311, 4
        %v313 = vand.u32 %v311, 15
        %v314 = vsub.s32 0, %v313
        %v315 = vsel %vm309, %v314, %v313
        %vm316 = vcmp.ne.s32.totalorder %v308, 0
        %vm317 = vcmp.ne.s32.totalorder %v315, 0
        %vm318 = vcmp.lt.s32.totalorder %v308, 0
        %vm319 = vcmp.lt.s32.totalorder %v315, 0
        %vm320 = vmand %vm318, %vm316
        %vm321 = vmand %vm319, %vm317
        %v322 = vadd.s32 %v308, 16
        %v323 = vadd.s32 %v315, 16
        %v324 = vsel %vm320, %v322, %v308
        %v325 = vsel %vm321, %v323, %v315
        %vm326 = vcmp.ge.s32.totalorder %v324, 1
        %vm327 = vcmp.ge.s32.totalorder %v325, 1
        %vm328 = vcmp.le.s32.totalorder %v324, 14
        %vm329 = vcmp.le.s32.totalorder %v325, 14
        %v330 = vsel %vm326, 1, 0
        %v331 = vsel %vm327, 1, 0
        %vm332 = vcmp.eq.s32.totalorder %v330, 1
        %vm333 = vcmp.eq.s32.totalorder %v331, 1
        %vm334 = vmpackc.low %vm333, %vm332
        %v335 = vsel %vm334, 65537, 0
        %v336 = vlaneseq
        %v337 = vshrl.u32 %v336, 7
        %v338 = vsub.s32 0, %v337
        %v339 = vrot.slane %v335, %v338
        %v340 = vlaneseq
        %v341 = vshrl.u32 %v340, 7
        %v342 = vsub.s32 4, %v341
        %v343 = vrot.slane %v335, %v342
        %344 = vrot.lane.b32.xlu0 %v339, 111
        %v345 = vpop.permute.xlu0 %344
        %346 = vrot.lane.b32.xlu0 %v343, 111
        %v347 = vpop.permute.xlu0 %346
        %vm348 = vcmask 908288
        %v349 = vsel %vm348, %v345, %v347
        %vm350 = vcmp.ne.s16.totalorder %v349, 0
        %vm351 = vcmp.ne.s16.totalorder %v347, 0
        %v352 = vsel %vm350, %v283, 0
        %v353 = vsel %vm351, %v284, 0
        %v354 = vsel %vm350, %v285, 0
        %v355 = vsel %vm351, %v286, 0
        %v356 = vsel %vm350, %v287, 0
        %v357 = vsel %vm351, %v288, 0
        %v358 = vsel %vm350, %v289, 0
        %v359 = vsel %vm351, %v290, 0
        %v360 = vsel %vm328, 1, 0
        %v361 = vsel %vm329, 1, 0
        %vm362 = vcmp.eq.s32.totalorder %v360, 1
        %vm363 = vcmp.eq.s32.totalorder %v361, 1
        %vm364 = vmpackc.low %vm363, %vm362
        %v365 = vsel %vm364, 65537, 0
        %v366 = vlaneseq
        %v367 = vshrl.u32 %v366, 7
        %v368 = vsub.s32 0, %v367
        %v369 = vrot.slane %v365, %v368
        %v370 = vlaneseq
        %v371 = vshrl.u32 %v370, 7
        %v372 = vsub.s32 4, %v371
        %v373 = vrot.slane %v365, %v372
        %374 = vrot.lane.b32.xlu0 %v369, 113
        %v375 = vpop.permute.xlu0 %374
        %376 = vrot.lane.b32.xlu0 %v373, 113
        %v377 = vpop.permute.xlu0 %376
        %vm378 = vcmask 924672
        %v379 = vsel %vm378, %v375, %v377
        %vm380 = vcmp.ne.s16.totalorder %v379, 0
        %vm381 = vcmp.ne.s16.totalorder %v377, 0
        %v382 = vsel %vm380, %v283, 0
        %v383 = vsel %vm381, %v284, 0
        %v384 = vsel %vm380, %v285, 0
        %v385 = vsel %vm381, %v286, 0
        %v386 = vsel %vm380, %v287, 0
        %v387 = vsel %vm381, %v288, 0
        %v388 = vsel %vm380, %v289, 0
        %v389 = vsel %vm381, %v290, 0
        %390 = vrot.lane.b32.xlu0 %v339, 127
        %v391 = vpop.permute.xlu0 %390
        %392 = vrot.lane.b32.xlu0 %v343, 127
        %v393 = vpop.permute.xlu0 %392
        %vm394 = vcmask 1039360
        %v395 = vsel %vm394, %v391, %v393
        %vm396 = vcmp.ne.s16.totalorder %v395, 0
        %vm397 = vcmp.ne.s16.totalorder %v393, 0
        %v398 = vsel %vm396, %v283, 0
        %v399 = vsel %vm397, %v284, 0
        %v400 = vsel %vm396, %v285, 0
        %v401 = vsel %vm397, %v286, 0
        %v402 = vsel %vm396, %v287, 0
        %v403 = vsel %vm397, %v288, 0
        %v404 = vsel %vm396, %v289, 0
        %v405 = vsel %vm397, %v290, 0
        %406 = vrot.lane.b32.xlu0 %v369, 1
        %v407 = vpop.permute.xlu0 %406
        %408 = vrot.lane.b32.xlu0 %v373, 1
        %v409 = vpop.permute.xlu0 %408
        %vm410 = vcmask 7168
        %v411 = vsel %vm410, %v407, %v409
        %vm412 = vcmp.ne.s16.totalorder %v407, 0
        %vm413 = vcmp.ne.s16.totalorder %v411, 0
        %v414 = vsel %vm412, %v283, 0
        %v415 = vsel %vm413, %v284, 0
        %v416 = vsel %vm412, %v285, 0
        %v417 = vsel %vm413, %v286, 0
        %v418 = vsel %vm412, %v287, 0
        %v419 = vsel %vm413, %v288, 0
        %v420 = vsel %vm412, %v289, 0
        %v421 = vsel %vm413, %v290, 0
        %422 = vrot.lane.b32.xlu0 %v339, 15
        %v423 = vpop.permute.xlu0 %422
        %424 = vrot.lane.b32.xlu0 %v343, 15
        %v425 = vpop.permute.xlu0 %424
        %vm426 = vcmask 121856
        %v427 = vsel %vm426, %v423, %v425
        %vm428 = vcmp.ne.s16.totalorder %v423, 0
        %vm429 = vcmp.ne.s16.totalorder %v427, 0
        %v430 = vsel %vm428, %v283, 0
        %v431 = vsel %vm429, %v284, 0
        %v432 = vsel %vm428, %v285, 0
        %v433 = vsel %vm429, %v286, 0
        %v434 = vsel %vm428, %v287, 0
        %v435 = vsel %vm429, %v288, 0
        %v436 = vsel %vm428, %v289, 0
        %v437 = vsel %vm429, %v290, 0
        %438 = vrot.lane.b32.xlu0 %v369, 17
        %v439 = vpop.permute.xlu0 %438
        %440 = vrot.lane.b32.xlu0 %v373, 17
        %v441 = vpop.permute.xlu0 %440
        %vm442 = vcmask 138240
        %v443 = vsel %vm442, %v439, %v441
        %vm444 = vcmp.ne.s16.totalorder %v439, 0
        %vm445 = vcmp.ne.s16.totalorder %v443, 0
        %v446 = vsel %vm444, %v283, 0
        %v447 = vsel %vm445, %v284, 0
        %v448 = vsel %vm444, %v285, 0
        %v449 = vsel %vm445, %v286, 0
        %v450 = vsel %vm444, %v287, 0
        %v451 = vsel %vm445, %v288, 0
        %v452 = vsel %vm444, %v289, 0
        %v453 = vsel %vm445, %v290, 0
        %455 = vrot.lane.b32.xlu0 0, 127
        %v456 = vpop.permute.xlu0 %455
        %457 = vrot.lane.b32.xlu0 %v283, 127
        %v458 = vpop.permute.xlu0 %457
        %459 = vrot.lane.b32.xlu0 %v284, 127
        %v460 = vpop.permute.xlu0 %459
        %461 = vrot.lane.b32.xlu0 %v285, 127
        %v462 = vpop.permute.xlu0 %461
        %463 = vrot.lane.b32.xlu0 %v286, 127
        %v464 = vpop.permute.xlu0 %463
        %465 = vrot.lane.b32.xlu0 %v287, 127
        %v466 = vpop.permute.xlu0 %465
        %467 = vrot.lane.b32.xlu0 %v288, 127
        %v468 = vpop.permute.xlu0 %467
        %469 = vrot.lane.b32.xlu0 %v289, 127
        %v470 = vpop.permute.xlu0 %469
        %471 = vrot.lane.b32.xlu0 %v290, 127
        %v472 = vpop.permute.xlu0 %471
        %v473 = vsel %vm394, %v456, %v458
        %v474 = vsel %vm394, %v458, %v460
        %v475 = vsel %vm394, %v456, %v462
        %v476 = vsel %vm394, %v462, %v464
        %v477 = vsel %vm394, %v456, %v466
        %v478 = vsel %vm394, %v466, %v468
        %v479 = vsel %vm394, %v456, %v470
        %v480 = vsel %vm394, %v470, %v472
        %489 = vrot.lane.b32.xlu0 0, 126
        %v490 = vpop.permute.xlu0 %489
        %491 = vrot.lane.b32.xlu0 %v382, 126
        %v492 = vpop.permute.xlu0 %491
        %493 = vrot.lane.b32.xlu0 %v383, 126
        %v494 = vpop.permute.xlu0 %493
        %495 = vrot.lane.b32.xlu0 %v384, 126
        %v496 = vpop.permute.xlu0 %495
        %497 = vrot.lane.b32.xlu0 %v385, 126
        %v498 = vpop.permute.xlu0 %497
        %499 = vrot.lane.b32.xlu0 %v386, 126
        %v500 = vpop.permute.xlu0 %499
        %501 = vrot.lane.b32.xlu0 %v387, 126
        %v502 = vpop.permute.xlu0 %501
        %503 = vrot.lane.b32.xlu0 %v388, 126
        %v504 = vpop.permute.xlu0 %503
        %505 = vrot.lane.b32.xlu0 %v389, 126
        %v506 = vpop.permute.xlu0 %505
        %vm507 = vcmask 1031168
        %v508 = vsel %vm507, %v490, %v492
        %v509 = vsel %vm507, %v492, %v494
        %v510 = vsel %vm507, %v490, %v496
        %v511 = vsel %vm507, %v496, %v498
        %v512 = vsel %vm507, %v490, %v500
        %v513 = vsel %vm507, %v500, %v502
        %v514 = vsel %vm507, %v490, %v504
        %v515 = vsel %vm507, %v504, %v506
        %524 = vrot.lane.b32.xlu0 0, 112
        %v525 = vpop.permute.xlu0 %524
        %526 = vrot.lane.b32.xlu0 %v398, 112
        %v527 = vpop.permute.xlu0 %526
        %528 = vrot.lane.b32.xlu0 %v399, 112
        %v529 = vpop.permute.xlu0 %528
        %530 = vrot.lane.b32.xlu0 %v400, 112
        %v531 = vpop.permute.xlu0 %530
        %532 = vrot.lane.b32.xlu0 %v401, 112
        %v533 = vpop.permute.xlu0 %532
        %534 = vrot.lane.b32.xlu0 %v402, 112
        %v535 = vpop.permute.xlu0 %534
        %536 = vrot.lane.b32.xlu0 %v403, 112
        %v537 = vpop.permute.xlu0 %536
        %538 = vrot.lane.b32.xlu0 %v404, 112
        %v539 = vpop.permute.xlu0 %538
        %540 = vrot.lane.b32.xlu0 %v405, 112
        %v541 = vpop.permute.xlu0 %540
        %vm542 = vcmask 916480
        %v543 = vsel %vm542, %v525, %v527
        %v544 = vsel %vm542, %v527, %v529
        %v545 = vsel %vm542, %v525, %v531
        %v546 = vsel %vm542, %v531, %v533
        %v547 = vsel %vm542, %v525, %v535
        %v548 = vsel %vm542, %v535, %v537
        %v549 = vsel %vm542, %v525, %v539
        %v550 = vsel %vm542, %v539, %v541
        %551 = vrot.lane.b32.xlu0 %v283, 111
        %v552 = vpop.permute.xlu0 %551
        %553 = vrot.lane.b32.xlu0 %v284, 111
        %v554 = vpop.permute.xlu0 %553
        %555 = vrot.lane.b32.xlu0 %v285, 111
        %v556 = vpop.permute.xlu0 %555
        %557 = vrot.lane.b32.xlu0 %v286, 111
        %v558 = vpop.permute.xlu0 %557
        %559 = vrot.lane.b32.xlu0 %v287, 111
        %v560 = vpop.permute.xlu0 %559
        %561 = vrot.lane.b32.xlu0 %v288, 111
        %v562 = vpop.permute.xlu0 %561
        %563 = vrot.lane.b32.xlu0 %v289, 111
        %v564 = vpop.permute.xlu0 %563
        %565 = vrot.lane.b32.xlu0 %v290, 111
        %v566 = vpop.permute.xlu0 %565
        %v567 = vsel %vm348, %v552, %v554
        %v568 = vsel %vm348, %v556, %v558
        %v569 = vsel %vm348, %v560, %v562
        %v570 = vsel %vm348, %v564, %v566
        %579 = vrot.lane.b32.xlu0 %v414, 110
        %v580 = vpop.permute.xlu0 %579
        %581 = vrot.lane.b32.xlu0 %v415, 110
        %v582 = vpop.permute.xlu0 %581
        %583 = vrot.lane.b32.xlu0 0, 110
        %v584 = vpop.permute.xlu0 %583
        %585 = vrot.lane.b32.xlu0 %v416, 110
        %v586 = vpop.permute.xlu0 %585
        %587 = vrot.lane.b32.xlu0 %v417, 110
        %v588 = vpop.permute.xlu0 %587
        %589 = vrot.lane.b32.xlu0 %v418, 110
        %v590 = vpop.permute.xlu0 %589
        %591 = vrot.lane.b32.xlu0 %v419, 110
        %v592 = vpop.permute.xlu0 %591
        %593 = vrot.lane.b32.xlu0 %v420, 110
        %v594 = vpop.permute.xlu0 %593
        %595 = vrot.lane.b32.xlu0 %v421, 110
        %v596 = vpop.permute.xlu0 %595
        %vm597 = vcmask 900096
        %v598 = vsel %vm597, %v580, %v582
        %v599 = vsel %vm597, %v582, %v584
        %v600 = vsel %vm597, %v586, %v588
        %v601 = vsel %vm597, %v588, %v584
        %v602 = vsel %vm597, %v590, %v592
        %v603 = vsel %vm597, %v592, %v584
        %v604 = vsel %vm597, %v594, %v596
        %v605 = vsel %vm597, %v596, %v584
        %614 = vrot.lane.b32.xlu0 %v430, 96
        %v615 = vpop.permute.xlu0 %614
        %616 = vrot.lane.b32.xlu0 %v431, 96
        %v617 = vpop.permute.xlu0 %616
        %618 = vrot.lane.b32.xlu0 0, 96
        %v619 = vpop.permute.xlu0 %618
        %620 = vrot.lane.b32.xlu0 %v432, 96
        %v621 = vpop.permute.xlu0 %620
        %622 = vrot.lane.b32.xlu0 %v433, 96
        %v623 = vpop.permute.xlu0 %622
        %624 = vrot.lane.b32.xlu0 %v434, 96
        %v625 = vpop.permute.xlu0 %624
        %626 = vrot.lane.b32.xlu0 %v435, 96
        %v627 = vpop.permute.xlu0 %626
        %628 = vrot.lane.b32.xlu0 %v436, 96
        %v629 = vpop.permute.xlu0 %628
        %630 = vrot.lane.b32.xlu0 %v437, 96
        %v631 = vpop.permute.xlu0 %630
        %vm632 = vcmask 785408
        %v633 = vsel %vm632, %v615, %v617
        %v634 = vsel %vm632, %v617, %v619
        %v635 = vsel %vm632, %v621, %v623
        %v636 = vsel %vm632, %v623, %v619
        %v637 = vsel %vm632, %v625, %v627
        %v638 = vsel %vm632, %v627, %v619
        %v639 = vsel %vm632, %v629, %v631
        %v640 = vsel %vm632, %v631, %v619
        %641 = vrot.lane.b32.xlu0 %v283, 95
        %v642 = vpop.permute.xlu0 %641
        %643 = vrot.lane.b32.xlu0 %v284, 95
        %v644 = vpop.permute.xlu0 %643
        %645 = vrot.lane.b32.xlu0 0, 95
        %v646 = vpop.permute.xlu0 %645
        %647 = vrot.lane.b32.xlu0 %v285, 95
        %v648 = vpop.permute.xlu0 %647
        %649 = vrot.lane.b32.xlu0 %v286, 95
        %v650 = vpop.permute.xlu0 %649
        %651 = vrot.lane.b32.xlu0 %v287, 95
        %v652 = vpop.permute.xlu0 %651
        %653 = vrot.lane.b32.xlu0 %v288, 95
        %v654 = vpop.permute.xlu0 %653
        %655 = vrot.lane.b32.xlu0 %v289, 95
        %v656 = vpop.permute.xlu0 %655
        %657 = vrot.lane.b32.xlu0 %v290, 95
        %v658 = vpop.permute.xlu0 %657
        %vm659 = vcmask 777216
        %v660 = vsel %vm659, %v642, %v644
        %v661 = vsel %vm659, %v644, %v646
        %v662 = vsel %vm659, %v648, %v650
        %v663 = vsel %vm659, %v650, %v646
        %v664 = vsel %vm659, %v652, %v654
        %v665 = vsel %vm659, %v654, %v646
        %v666 = vsel %vm659, %v656, %v658
        %v667 = vsel %vm659, %v658, %v646
        %676 = vrot.lane.b32.xlu0 %v446, 94
        %v677 = vpop.permute.xlu0 %676
        %678 = vrot.lane.b32.xlu0 %v447, 94
        %v679 = vpop.permute.xlu0 %678
        %680 = vrot.lane.b32.xlu0 0, 94
        %v681 = vpop.permute.xlu0 %680
        %682 = vrot.lane.b32.xlu0 %v448, 94
        %v683 = vpop.permute.xlu0 %682
        %684 = vrot.lane.b32.xlu0 %v449, 94
        %v685 = vpop.permute.xlu0 %684
        %686 = vrot.lane.b32.xlu0 %v450, 94
        %v687 = vpop.permute.xlu0 %686
        %688 = vrot.lane.b32.xlu0 %v451, 94
        %v689 = vpop.permute.xlu0 %688
        %690 = vrot.lane.b32.xlu0 %v452, 94
        %v691 = vpop.permute.xlu0 %690
        %692 = vrot.lane.b32.xlu0 %v453, 94
        %v693 = vpop.permute.xlu0 %692
        %vm694 = vcmask 769024
        %v695 = vsel %vm694, %v677, %v679
        %v696 = vsel %vm694, %v679, %v681
        %v697 = vsel %vm694, %v683, %v685
        %v698 = vsel %vm694, %v685, %v681
        %v699 = vsel %vm694, %v687, %v689
        %v700 = vsel %vm694, %v689, %v681
        %v701 = vsel %vm694, %v691, %v693
        %v702 = vsel %vm694, %v693, %v681
        %v703 = vld [vmem:[%s1] sm:$0xf]
        %v706 = vunpack.c.l.s4 1983009808
        %v707 = vunpack.c.0.s8 %v706
        %v708 = vlaneseq
        %v709 = vshrl.u32 %v708, 7
        %v710 = vsub.s32 %v707, %v709
        %v711 = vrot.slane %v703, %v710
        %v712 = vcombine.high %v711, %v711
        %716 = vrot.lane.b32.xlu0 0, 17
        %v717 = vpop.permute.xlu0 %716
        %718 = vrot.lane.b32.xlu0 %v352, 17
        %v719 = vpop.permute.xlu0 %718
        %720 = vrot.lane.b32.xlu0 %v353, 17
        %v721 = vpop.permute.xlu0 %720
        %722 = vrot.lane.b32.xlu0 %v473, 17
        %v723 = vpop.permute.xlu0 %722
        %724 = vrot.lane.b32.xlu0 %v474, 17
        %v725 = vpop.permute.xlu0 %724
        %726 = vrot.lane.b32.xlu0 %v460, 17
        %v727 = vpop.permute.xlu0 %726
        %728 = vrot.lane.b32.xlu0 %v508, 17
        %v729 = vpop.permute.xlu0 %728
        %730 = vrot.lane.b32.xlu0 %v509, 17
        %v731 = vpop.permute.xlu0 %730
        %732 = vrot.lane.b32.xlu0 %v494, 17
        %v733 = vpop.permute.xlu0 %732
        %734 = vrot.lane.b32.xlu0 %v543, 17
        %v735 = vpop.permute.xlu0 %734
        %736 = vrot.lane.b32.xlu0 %v544, 17
        %v737 = vpop.permute.xlu0 %736
        %738 = vrot.lane.b32.xlu0 %v529, 17
        %v739 = vpop.permute.xlu0 %738
        %740 = vrot.lane.b32.xlu0 %v552, 17
        %v741 = vpop.permute.xlu0 %740
        %742 = vrot.lane.b32.xlu0 %v567, 17
        %v743 = vpop.permute.xlu0 %742
        %744 = vrot.lane.b32.xlu0 %v554, 17
        %v745 = vpop.permute.xlu0 %744
        %746 = vrot.lane.b32.xlu0 %v580, 17
        %v747 = vpop.permute.xlu0 %746
        %748 = vrot.lane.b32.xlu0 %v598, 17
        %v749 = vpop.permute.xlu0 %748
        %750 = vrot.lane.b32.xlu0 %v599, 17
        %v751 = vpop.permute.xlu0 %750
        %752 = vrot.lane.b32.xlu0 %v615, 17
        %v753 = vpop.permute.xlu0 %752
        %754 = vrot.lane.b32.xlu0 %v633, 17
        %v755 = vpop.permute.xlu0 %754
        %756 = vrot.lane.b32.xlu0 %v634, 17
        %v757 = vpop.permute.xlu0 %756
        %758 = vrot.lane.b32.xlu0 %v642, 17
        %v759 = vpop.permute.xlu0 %758
        %760 = vrot.lane.b32.xlu0 %v660, 17
        %v761 = vpop.permute.xlu0 %760
        %762 = vrot.lane.b32.xlu0 %v661, 17
        %v763 = vpop.permute.xlu0 %762
        %764 = vrot.lane.b32.xlu0 %v677, 17
        %v765 = vpop.permute.xlu0 %764
        %766 = vrot.lane.b32.xlu0 %v695, 17
        %v767 = vpop.permute.xlu0 %766
        %768 = vrot.lane.b32.xlu0 %v696, 17
        %v769 = vpop.permute.xlu0 %768
        %v770 = vsel %vm442, %v717, %v719
        %v771 = vsel %vm442, %v719, %v721
        %v772 = vsel %vm442, %v723, %v725
        %v773 = vsel %vm442, %v725, %v727
        %v774 = vsel %vm442, %v729, %v731
        %v775 = vsel %vm442, %v731, %v733
        %v776 = vsel %vm442, %v735, %v737
        %v777 = vsel %vm442, %v737, %v739
        %v778 = vsel %vm442, %v741, %v743
        %v779 = vsel %vm442, %v743, %v745
        %v780 = vsel %vm442, %v747, %v749
        %v781 = vsel %vm442, %v749, %v751
        %v782 = vsel %vm442, %v753, %v755
        %v783 = vsel %vm442, %v755, %v757
        %v784 = vsel %vm442, %v759, %v761
        %v785 = vsel %vm442, %v761, %v763
        %v786 = vsel %vm442, %v765, %v767
        %v787 = vsel %vm442, %v767, %v769
        %vm806 = vcmask 130048
        %v808 = vsel %vm806, %v712, 0
        %810 = vmatprep.subr.bf16.mxu0 %v785
        %811 = vmatpush1.bf16.msra.mxu0 %v784
        %812 = vmatprep.subr.bf16.mxu0 %v783
        %813 = vmatpush1.bf16.msra.mxu0 %v782
        %814 = vmatprep.subr.bf16.mxu0 %v781
        %815 = vmatpush1.bf16.msra.mxu0 %v780
        %816 = vmatprep.subr.bf16.mxu0 %v779
        %817 = vmatpush1.bf16.msra.mxu0 %v778
        %818 = vmatprep.subr.bf16.mxu0 %v777
        %819 = vmatpush1.bf16.msra.mxu0 %v776
        %820 = vmatprep.subr.bf16.mxu0 %v775
        %821 = vmatpush1.bf16.msra.mxu0 %v774
        %822 = vmatprep.subr.bf16.mxu0 %v773
        %823 = vmatpush1.bf16.msra.mxu0 %v772
        %824 = vmatprep.subr.bf16.mxu0 %v771
        %825 = vmatpush1.bf16.msra.mxu0 %v770
        %826 = vmatprep.subr.bf16.mxu0 0
        %827 = vmatpush2.bf16.msra.mxu0 0
        %828 = vmatprep.subr.bf16.mxu0 0
        %829 = vmatpush2.bf16.msra.mxu0 0
        %830 = vmatprep.subr.bf16.mxu0 0
        %831 = vmatpush2.bf16.msra.mxu0 0
        %832 = vmatprep.subr.bf16.mxu0 0
        %833 = vmatpush2.bf16.msra.mxu0 0
        %834 = vmatprep.subr.bf16.mxu0 0
        %835 = vmatpush2.bf16.msra.mxu0 0
        %836 = vmatprep.subr.bf16.mxu0 0
        %837 = vmatpush2.bf16.msra.mxu0 0
        %838 = vmatprep.subr.bf16.mxu0 0
        %839 = vmatpush2.bf16.msra.mxu0 0
        %840 = vmatprep.subr.bf16.mxu0 %v787
        %841 = vmatpush2.bf16.msra.mxu0 %v786
        %842 = vmatprep.mubr.bf16.mxu0 %v808
        %843 = vmatmul.mubr.bf16.gmra.mxu0 %v711
        %v844 = vpop.f32.mrf.mxu0
        %v845 = vadd.f32 0.0, %v844
        %v846 = vpop.f32.mrf.mxu0
        %v847 = vadd.f32 0.0, %v846
        %v848 = vpop.f32.mrf.mxu0
        %v849 = vpop.f32.mrf.mxu0
        %850 = vdwg.mxu0
        %853 = vrot.lane.b32.xlu0 %v354, 17
        %v854 = vpop.permute.xlu0 %853
        %855 = vrot.lane.b32.xlu0 %v355, 17
        %v856 = vpop.permute.xlu0 %855
        %857 = vrot.lane.b32.xlu0 %v475, 17
        %v858 = vpop.permute.xlu0 %857
        %859 = vrot.lane.b32.xlu0 %v476, 17
        %v860 = vpop.permute.xlu0 %859
        %861 = vrot.lane.b32.xlu0 %v464, 17
        %v862 = vpop.permute.xlu0 %861
        %863 = vrot.lane.b32.xlu0 %v510, 17
        %v864 = vpop.permute.xlu0 %863
        %865 = vrot.lane.b32.xlu0 %v511, 17
        %v866 = vpop.permute.xlu0 %865
        %867 = vrot.lane.b32.xlu0 %v498, 17
        %v868 = vpop.permute.xlu0 %867
        %869 = vrot.lane.b32.xlu0 %v545, 17
        %v870 = vpop.permute.xlu0 %869
        %871 = vrot.lane.b32.xlu0 %v546, 17
        %v872 = vpop.permute.xlu0 %871
        %873 = vrot.lane.b32.xlu0 %v533, 17
        %v874 = vpop.permute.xlu0 %873
        %875 = vrot.lane.b32.xlu0 %v556, 17
        %v876 = vpop.permute.xlu0 %875
        %877 = vrot.lane.b32.xlu0 %v568, 17
        %v878 = vpop.permute.xlu0 %877
        %879 = vrot.lane.b32.xlu0 %v558, 17
        %v880 = vpop.permute.xlu0 %879
        %881 = vrot.lane.b32.xlu0 %v586, 17
        %v882 = vpop.permute.xlu0 %881
        %883 = vrot.lane.b32.xlu0 %v600, 17
        %v884 = vpop.permute.xlu0 %883
        %885 = vrot.lane.b32.xlu0 %v601, 17
        %v886 = vpop.permute.xlu0 %885
        %887 = vrot.lane.b32.xlu0 %v621, 17
        %v888 = vpop.permute.xlu0 %887
        %889 = vrot.lane.b32.xlu0 %v635, 17
        %v890 = vpop.permute.xlu0 %889
        %891 = vrot.lane.b32.xlu0 %v636, 17
        %v892 = vpop.permute.xlu0 %891
        %893 = vrot.lane.b32.xlu0 %v648, 17
        %v894 = vpop.permute.xlu0 %893
        %895 = vrot.lane.b32.xlu0 %v662, 17
        %v896 = vpop.permute.xlu0 %895
        %897 = vrot.lane.b32.xlu0 %v663, 17
        %v898 = vpop.permute.xlu0 %897
        %899 = vrot.lane.b32.xlu0 %v683, 17
        %v900 = vpop.permute.xlu0 %899
        %901 = vrot.lane.b32.xlu0 %v697, 17
        %v902 = vpop.permute.xlu0 %901
        %903 = vrot.lane.b32.xlu0 %v698, 17
        %v904 = vpop.permute.xlu0 %903
        %v905 = vsel %vm442, %v717, %v854
        %v906 = vsel %vm442, %v854, %v856
        %v907 = vsel %vm442, %v858, %v860
        %v908 = vsel %vm442, %v860, %v862
        %v909 = vsel %vm442, %v864, %v866
        %v910 = vsel %vm442, %v866, %v868
        %v911 = vsel %vm442, %v870, %v872
        %v912 = vsel %vm442, %v872, %v874
        %v913 = vsel %vm442, %v876, %v878
        %v914 = vsel %vm442, %v878, %v880
        %v915 = vsel %vm442, %v882, %v884
        %v916 = vsel %vm442, %v884, %v886
        %v917 = vsel %vm442, %v888, %v890
        %v918 = vsel %vm442, %v890, %v892
        %v919 = vsel %vm442, %v894, %v896
        %v920 = vsel %vm442, %v896, %v898
        %v921 = vsel %vm442, %v900, %v902
        %v922 = vsel %vm442, %v902, %v904
        %941 = vmatprep.subr.bf16.mxu0 %v920
        %942 = vmatpush1.bf16.msra.mxu0 %v919
        %943 = vmatprep.subr.bf16.mxu0 %v918
        %944 = vmatpush1.bf16.msra.mxu0 %v917
        %945 = vmatprep.subr.bf16.mxu0 %v916
        %946 = vmatpush1.bf16.msra.mxu0 %v915
        %947 = vmatprep.subr.bf16.mxu0 %v914
        %948 = vmatpush1.bf16.msra.mxu0 %v913
        %949 = vmatprep.subr.bf16.mxu0 %v912
        %950 = vmatpush1.bf16.msra.mxu0 %v911
        %951 = vmatprep.subr.bf16.mxu0 %v910
        %952 = vmatpush1.bf16.msra.mxu0 %v909
        %953 = vmatprep.subr.bf16.mxu0 %v908
        %954 = vmatpush1.bf16.msra.mxu0 %v907
        %955 = vmatprep.subr.bf16.mxu0 %v906
        %956 = vmatpush1.bf16.msra.mxu0 %v905
        %957 = vmatprep.subr.bf16.mxu0 0
        %958 = vmatpush2.bf16.msra.mxu0 0
        %959 = vmatprep.subr.bf16.mxu0 0
        %960 = vmatpush2.bf16.msra.mxu0 0
        %961 = vmatprep.subr.bf16.mxu0 0
        %962 = vmatpush2.bf16.msra.mxu0 0
        %963 = vmatprep.subr.bf16.mxu0 0
        %964 = vmatpush2.bf16.msra.mxu0 0
        %965 = vmatprep.subr.bf16.mxu0 0
        %966 = vmatpush2.bf16.msra.mxu0 0
        %967 = vmatprep.subr.bf16.mxu0 0
        %968 = vmatpush2.bf16.msra.mxu0 0
        %969 = vmatprep.subr.bf16.mxu0 0
        %970 = vmatpush2.bf16.msra.mxu0 0
        %971 = vmatprep.subr.bf16.mxu0 %v922
        %972 = vmatpush2.bf16.msra.mxu0 %v921
        %973 = vmatprep.mubr.bf16.mxu0 %v808
        %974 = vmatmul.mubr.bf16.gmra.mxu0 %v711
        %v975 = vpop.f32.mrf.mxu0
        %v976 = vadd.f32 0.0, %v975
        %v977 = vpop.f32.mrf.mxu0
        %v978 = vadd.f32 0.0, %v977
        %v979 = vpop.f32.mrf.mxu0
        %v980 = vpop.f32.mrf.mxu0
        %981 = vdwg.mxu0
        %984 = vrot.lane.b32.xlu0 %v356, 17
        %v985 = vpop.permute.xlu0 %984
        %986 = vrot.lane.b32.xlu0 %v357, 17
        %v987 = vpop.permute.xlu0 %986
        %988 = vrot.lane.b32.xlu0 %v477, 17
        %v989 = vpop.permute.xlu0 %988
        %990 = vrot.lane.b32.xlu0 %v478, 17
        %v991 = vpop.permute.xlu0 %990
        %992 = vrot.lane.b32.xlu0 %v468, 17
        %v993 = vpop.permute.xlu0 %992
        %994 = vrot.lane.b32.xlu0 %v512, 17
        %v995 = vpop.permute.xlu0 %994
        %996 = vrot.lane.b32.xlu0 %v513, 17
        %v997 = vpop.permute.xlu0 %996
        %998 = vrot.lane.b32.xlu0 %v502, 17
        %v999 = vpop.permute.xlu0 %998
        %1000 = vrot.lane.b32.xlu0 %v547, 17
        %v1001 = vpop.permute.xlu0 %1000
        %1002 = vrot.lane.b32.xlu0 %v548, 17
        %v1003 = vpop.permute.xlu0 %1002
        %1004 = vrot.lane.b32.xlu0 %v537, 17
        %v1005 = vpop.permute.xlu0 %1004
        %1006 = vrot.lane.b32.xlu0 %v560, 17
        %v1007 = vpop.permute.xlu0 %1006
        %1008 = vrot.lane.b32.xlu0 %v569, 17
        %v1009 = vpop.permute.xlu0 %1008
        %1010 = vrot.lane.b32.xlu0 %v562, 17
        %v1011 = vpop.permute.xlu0 %1010
        %1012 = vrot.lane.b32.xlu0 %v590, 17
        %v1013 = vpop.permute.xlu0 %1012
        %1014 = vrot.lane.b32.xlu0 %v602, 17
        %v1015 = vpop.permute.xlu0 %1014
        %1016 = vrot.lane.b32.xlu0 %v603, 17
        %v1017 = vpop.permute.xlu0 %1016
        %1018 = vrot.lane.b32.xlu0 %v625, 17
        %v1019 = vpop.permute.xlu0 %1018
        %1020 = vrot.lane.b32.xlu0 %v637, 17
        %v1021 = vpop.permute.xlu0 %1020
        %1022 = vrot.lane.b32.xlu0 %v638, 17
        %v1023 = vpop.permute.xlu0 %1022
        %1024 = vrot.lane.b32.xlu0 %v652, 17
        %v1025 = vpop.permute.xlu0 %1024
        %1026 = vrot.lane.b32.xlu0 %v664, 17
        %v1027 = vpop.permute.xlu0 %1026
        %1028 = vrot.lane.b32.xlu0 %v665, 17
        %v1029 = vpop.permute.xlu0 %1028
        %1030 = vrot.lane.b32.xlu0 %v687, 17
        %v1031 = vpop.permute.xlu0 %1030
        %1032 = vrot.lane.b32.xlu0 %v699, 17
        %v1033 = vpop.permute.xlu0 %1032
        %1034 = vrot.lane.b32.xlu0 %v700, 17
        %v1035 = vpop.permute.xlu0 %1034
        %v1036 = vsel %vm442, %v717, %v985
        %v1037 = vsel %vm442, %v985, %v987
        %v1038 = vsel %vm442, %v989, %v991
        %v1039 = vsel %vm442, %v991, %v993
        %v1040 = vsel %vm442, %v995, %v997
        %v1041 = vsel %vm442, %v997, %v999
        %v1042 = vsel %vm442, %v1001, %v1003
        %v1043 = vsel %vm442, %v1003, %v1005
        %v1044 = vsel %vm442, %v1007, %v1009
        %v1045 = vsel %vm442, %v1009, %v1011
        %v1046 = vsel %vm442, %v1013, %v1015
        %v1047 = vsel %vm442, %v1015, %v1017
        %v1048 = vsel %vm442, %v1019, %v1021
        %v1049 = vsel %vm442, %v1021, %v1023
        %v1050 = vsel %vm442, %v1025, %v1027
        %v1051 = vsel %vm442, %v1027, %v1029
        %v1052 = vsel %vm442, %v1031, %v1033
        %v1053 = vsel %vm442, %v1033, %v1035
        %1072 = vmatprep.subr.bf16.mxu0 %v1051
        %1073 = vmatpush1.bf16.msra.mxu0 %v1050
        %1074 = vmatprep.subr.bf16.mxu0 %v1049
        %1075 = vmatpush1.bf16.msra.mxu0 %v1048
        %1076 = vmatprep.subr.bf16.mxu0 %v1047
        %1077 = vmatpush1.bf16.msra.mxu0 %v1046
        %1078 = vmatprep.subr.bf16.mxu0 %v1045
        %1079 = vmatpush1.bf16.msra.mxu0 %v1044
        %1080 = vmatprep.subr.bf16.mxu0 %v1043
        %1081 = vmatpush1.bf16.msra.mxu0 %v1042
        %1082 = vmatprep.subr.bf16.mxu0 %v1041
        %1083 = vmatpush1.bf16.msra.mxu0 %v1040
        %1084 = vmatprep.subr.bf16.mxu0 %v1039
        %1085 = vmatpush1.bf16.msra.mxu0 %v1038
        %1086 = vmatprep.subr.bf16.mxu0 %v1037
        %1087 = vmatpush1.bf16.msra.mxu0 %v1036
        %1088 = vmatprep.subr.bf16.mxu0 0
        %1089 = vmatpush2.bf16.msra.mxu0 0
        %1090 = vmatprep.subr.bf16.mxu0 0
        %1091 = vmatpush2.bf16.msra.mxu0 0
        %1092 = vmatprep.subr.bf16.mxu0 0
        %1093 = vmatpush2.bf16.msra.mxu0 0
        %1094 = vmatprep.subr.bf16.mxu0 0
        %1095 = vmatpush2.bf16.msra.mxu0 0
        %1096 = vmatprep.subr.bf16.mxu0 0
        %1097 = vmatpush2.bf16.msra.mxu0 0
        %1098 = vmatprep.subr.bf16.mxu0 0
        %1099 = vmatpush2.bf16.msra.mxu0 0
        %1100 = vmatprep.subr.bf16.mxu0 0
        %1101 = vmatpush2.bf16.msra.mxu0 0
        %1102 = vmatprep.subr.bf16.mxu0 %v1053
        %1103 = vmatpush2.bf16.msra.mxu0 %v1052
        %1104 = vmatprep.mubr.bf16.mxu0 %v808
        %1105 = vmatmul.mubr.bf16.gmra.mxu0 %v711
        %v1106 = vpop.f32.mrf.mxu0
        %v1107 = vadd.f32 0.0, %v1106
        %v1108 = vpop.f32.mrf.mxu0
        %v1109 = vadd.f32 0.0, %v1108
        %v1110 = vpop.f32.mrf.mxu0
        %v1111 = vpop.f32.mrf.mxu0
        %1112 = vdwg.mxu0
        %1115 = vrot.lane.b32.xlu0 %v358, 17
        %v1116 = vpop.permute.xlu0 %1115
        %1117 = vrot.lane.b32.xlu0 %v359, 17
        %v1118 = vpop.permute.xlu0 %1117
        %1119 = vrot.lane.b32.xlu0 %v479, 17
        %v1120 = vpop.permute.xlu0 %1119
        %1121 = vrot.lane.b32.xlu0 %v480, 17
        %v1122 = vpop.permute.xlu0 %1121
        %1123 = vrot.lane.b32.xlu0 %v472, 17
        %v1124 = vpop.permute.xlu0 %1123
        %1125 = vrot.lane.b32.xlu0 %v514, 17
        %v1126 = vpop.permute.xlu0 %1125
        %1127 = vrot.lane.b32.xlu0 %v515, 17
        %v1128 = vpop.permute.xlu0 %1127
        %1129 = vrot.lane.b32.xlu0 %v506, 17
        %v1130 = vpop.permute.xlu0 %1129
        %1131 = vrot.lane.b32.xlu0 %v549, 17
        %v1132 = vpop.permute.xlu0 %1131
        %1133 = vrot.lane.b32.xlu0 %v550, 17
        %v1134 = vpop.permute.xlu0 %1133
        %1135 = vrot.lane.b32.xlu0 %v541, 17
        %v1136 = vpop.permute.xlu0 %1135
        %1137 = vrot.lane.b32.xlu0 %v564, 17
        %v1138 = vpop.permute.xlu0 %1137
        %1139 = vrot.lane.b32.xlu0 %v570, 17
        %v1140 = vpop.permute.xlu0 %1139
        %1141 = vrot.lane.b32.xlu0 %v566, 17
        %v1142 = vpop.permute.xlu0 %1141
        %1143 = vrot.lane.b32.xlu0 %v594, 17
        %v1144 = vpop.permute.xlu0 %1143
        %1145 = vrot.lane.b32.xlu0 %v604, 17
        %v1146 = vpop.permute.xlu0 %1145
        %1147 = vrot.lane.b32.xlu0 %v605, 17
        %v1148 = vpop.permute.xlu0 %1147
        %1149 = vrot.lane.b32.xlu0 %v629, 17
        %v1150 = vpop.permute.xlu0 %1149
        %1151 = vrot.lane.b32.xlu0 %v639, 17
        %v1152 = vpop.permute.xlu0 %1151
        %1153 = vrot.lane.b32.xlu0 %v640, 17
        %v1154 = vpop.permute.xlu0 %1153
        %1155 = vrot.lane.b32.xlu0 %v656, 17
        %v1156 = vpop.permute.xlu0 %1155
        %1157 = vrot.lane.b32.xlu0 %v666, 17
        %v1158 = vpop.permute.xlu0 %1157
        %1159 = vrot.lane.b32.xlu0 %v667, 17
        %v1160 = vpop.permute.xlu0 %1159
        %1161 = vrot.lane.b32.xlu0 %v691, 17
        %v1162 = vpop.permute.xlu0 %1161
        %1163 = vrot.lane.b32.xlu0 %v701, 17
        %v1164 = vpop.permute.xlu0 %1163
        %1165 = vrot.lane.b32.xlu0 %v702, 17
        %v1166 = vpop.permute.xlu0 %1165
        %v1167 = vsel %vm442, %v717, %v1116
        %v1168 = vsel %vm442, %v1116, %v1118
        %v1169 = vsel %vm442, %v1120, %v1122
        %v1170 = vsel %vm442, %v1122, %v1124
        %v1171 = vsel %vm442, %v1126, %v1128
        %v1172 = vsel %vm442, %v1128, %v1130
        %v1173 = vsel %vm442, %v1132, %v1134
        %v1174 = vsel %vm442, %v1134, %v1136
        %v1175 = vsel %vm442, %v1138, %v1140
        %v1176 = vsel %vm442, %v1140, %v1142
        %v1177 = vsel %vm442, %v1144, %v1146
        %v1178 = vsel %vm442, %v1146, %v1148
        %v1179 = vsel %vm442, %v1150, %v1152
        %v1180 = vsel %vm442, %v1152, %v1154
        %v1181 = vsel %vm442, %v1156, %v1158
        %v1182 = vsel %vm442, %v1158, %v1160
        %v1183 = vsel %vm442, %v1162, %v1164
        %v1184 = vsel %vm442, %v1164, %v1166
        %1203 = vmatprep.subr.bf16.mxu0 %v1182
        %1204 = vmatpush1.bf16.msra.mxu0 %v1181
        %1205 = vmatprep.subr.bf16.mxu0 %v1180
        %1206 = vmatpush1.bf16.msra.mxu0 %v1179
        %1207 = vmatprep.subr.bf16.mxu0 %v1178
        %1208 = vmatpush1.bf16.msra.mxu0 %v1177
        %1209 = vmatprep.subr.bf16.mxu0 %v1176
        %1210 = vmatpush1.bf16.msra.mxu0 %v1175
        %1211 = vmatprep.subr.bf16.mxu0 %v1174
        %1212 = vmatpush1.bf16.msra.mxu0 %v1173
        %1213 = vmatprep.subr.bf16.mxu0 %v1172
        %1214 = vmatpush1.bf16.msra.mxu0 %v1171
        %1215 = vmatprep.subr.bf16.mxu0 %v1170
        %1216 = vmatpush1.bf16.msra.mxu0 %v1169
        %1217 = vmatprep.subr.bf16.mxu0 %v1168
        %1218 = vmatpush1.bf16.msra.mxu0 %v1167
        %1219 = vmatprep.subr.bf16.mxu0 0
        %1220 = vmatpush2.bf16.msra.mxu0 0
        %1221 = vmatprep.subr.bf16.mxu0 0
        %1222 = vmatpush2.bf16.msra.mxu0 0
        %1223 = vmatprep.subr.bf16.mxu0 0
        %1224 = vmatpush2.bf16.msra.mxu0 0
        %1225 = vmatprep.subr.bf16.mxu0 0
        %1226 = vmatpush2.bf16.msra.mxu0 0
        %1227 = vmatprep.subr.bf16.mxu0 0
        %1228 = vmatpush2.bf16.msra.mxu0 0
        %1229 = vmatprep.subr.bf16.mxu0 0
        %1230 = vmatpush2.bf16.msra.mxu0 0
        %1231 = vmatprep.subr.bf16.mxu0 0
        %1232 = vmatpush2.bf16.msra.mxu0 0
        %1233 = vmatprep.subr.bf16.mxu0 %v1184
        %1234 = vmatpush2.bf16.msra.mxu0 %v1183
        %1235 = vmatprep.mubr.bf16.mxu0 %v808
        %1236 = vmatmul.mubr.bf16.gmra.mxu0 %v711
        %v1237 = vpop.f32.mrf.mxu0
        %v1238 = vadd.f32 0.0, %v1237
        %v1239 = vpop.f32.mrf.mxu0
        %v1240 = vadd.f32 0.0, %v1239
        %v1241 = vpop.f32.mrf.mxu0
        %v1242 = vpop.f32.mrf.mxu0
        %1243 = vdwg.mxu0
        %v1244 = vld [vmem:[%s2] sm:$0xf]
        %1246 = vset.pattern.permute.xlu0 0
        %1247 = vperm.xlu0 %1246, %v1244
        %v1248 = vpop.permute.xlu0 %1247
        %v1250 = vadd.f32 %v845, %v1248
        %v1251 = vadd.f32 %v847, %v1248
        %v1252 = vadd.f32 %v976, %v1248
        %v1253 = vadd.f32 %v978, %v1248
        %v1254 = vadd.f32 %v1107, %v1248
        %v1255 = vadd.f32 %v1109, %v1248
        %v1256 = vadd.f32 %v1238, %v1248
        %v1257 = vadd.f32 %v1240, %v1248
        %v1258 = vmax.f32 %v1250, 0.0
        %v1259 = vmax.f32 %v1251, 0.0
        %v1260 = vmax.f32 %v1252, 0.0
        %v1261 = vmax.f32 %v1253, 0.0
        %v1262 = vmax.f32 %v1254, 0.0
        %v1263 = vmax.f32 %v1255, 0.0
        %v1264 = vmax.f32 %v1256, 0.0
        %v1265 = vmax.f32 %v1257, 0.0
        %v1266 = vld [vmem:[%s3] sm:$0xf]
        %1268 = vset.pattern.permute.xlu0 0
        %1269 = vperm.xlu0 %1268, %v1266
        %v1270 = vpop.permute.xlu0 %1269
        %v1272 = vmul.f32 %v1258, %v1270
        %v1273 = vmul.f32 %v1259, %v1270
        %v1274 = vmul.f32 %v1260, %v1270
        %v1275 = vmul.f32 %v1261, %v1270
        %v1276 = vmul.f32 %v1262, %v1270
        %v1277 = vmul.f32 %v1263, %v1270
        %v1278 = vmul.f32 %v1264, %v1270
        %v1279 = vmul.f32 %v1265, %v1270
        %vm1280 = vcmask 1043456
        %v1281 = vsel %vm1280, %v1272, 0.0
        %v1282 = vrot.slane %v1281, 4
        %v1283 = vadd.f32 %v1281, %v1282
        %v1284 = vrot.slane %v1283, 2
        %v1285 = vadd.f32 %v1283, %v1284
        %v1286 = vrot.slane %v1285, 1
        %v1287 = vadd.f32 %v1285, %v1286
        %v1288 = vsel %vm1280, %v1273, 0.0
        %v1289 = vrot.slane %v1288, 4
        %v1290 = vadd.f32 %v1288, %v1289
        %v1291 = vrot.slane %v1290, 2
        %v1292 = vadd.f32 %v1290, %v1291
        %v1293 = vrot.slane %v1292, 1
        %v1294 = vadd.f32 %v1292, %v1293
        %v1295 = vsel %vm1280, %v1274, 0.0
        %v1296 = vrot.slane %v1295, 4
        %v1297 = vadd.f32 %v1295, %v1296
        %v1298 = vrot.slane %v1297, 2
        %v1299 = vadd.f32 %v1297, %v1298
        %v1300 = vrot.slane %v1299, 1
        %v1301 = vadd.f32 %v1299, %v1300
        %v1302 = vsel %vm1280, %v1275, 0.0
        %v1303 = vrot.slane %v1302, 4
        %v1304 = vadd.f32 %v1302, %v1303
        %v1305 = vrot.slane %v1304, 2
        %v1306 = vadd.f32 %v1304, %v1305
        %v1307 = vrot.slane %v1306, 1
        %v1308 = vadd.f32 %v1306, %v1307
        %v1309 = vsel %vm1280, %v1276, 0.0
        %v1310 = vrot.slane %v1309, 4
        %v1311 = vadd.f32 %v1309, %v1310
        %v1312 = vrot.slane %v1311, 2
        %v1313 = vadd.f32 %v1311, %v1312
        %v1314 = vrot.slane %v1313, 1
        %v1315 = vadd.f32 %v1313, %v1314
        %v1316 = vsel %vm1280, %v1277, 0.0
        %v1317 = vrot.slane %v1316, 4
        %v1318 = vadd.f32 %v1316, %v1317
        %v1319 = vrot.slane %v1318, 2
        %v1320 = vadd.f32 %v1318, %v1319
        %v1321 = vrot.slane %v1320, 1
        %v1322 = vadd.f32 %v1320, %v1321
        %v1323 = vsel %vm1280, %v1278, 0.0
        %v1324 = vrot.slane %v1323, 4
        %v1325 = vadd.f32 %v1323, %v1324
        %v1326 = vrot.slane %v1325, 2
        %v1327 = vadd.f32 %v1325, %v1326
        %v1328 = vrot.slane %v1327, 1
        %v1329 = vadd.f32 %v1327, %v1328
        %v1330 = vsel %vm1280, %v1279, 0.0
        %v1331 = vrot.slane %v1330, 4
        %v1332 = vadd.f32 %v1330, %v1331
        %v1333 = vrot.slane %v1332, 2
        %v1334 = vadd.f32 %v1332, %v1333
        %v1335 = vrot.slane %v1334, 1
        %v1336 = vadd.f32 %v1334, %v1335
        %v1337 = vld [vmem:[#allocation2] sm:$0x1]
        %1339 = vset.pattern.permute.xlu0 0
        %1340 = vperm.xlu0 %1339, %v1337
        %v1341 = vpop.permute.xlu0 %1340
        %v1343 = vlaneseq
        %v1344 = vshrl.u32 %v1343, 7
        %v1345 = vsub.s32 0, %v1344
        %v1346 = vrot.slane %v1341, %v1345
        %v1347 = vadd.f32 %v1287, %v1346
        %v1348 = vadd.f32 %v1294, %v1346
        %v1349 = vadd.f32 %v1301, %v1346
        %v1350 = vadd.f32 %v1308, %v1346
        %v1351 = vadd.f32 %v1315, %v1346
        %v1352 = vadd.f32 %v1322, %v1346
        %v1353 = vadd.f32 %v1329, %v1346
        %v1354 = vadd.f32 %v1336, %v1346
        %v1363 = vcombine.low %v1347, %v1348
        %v1365 = vunpack.c.l.s4 1966171168
        %v1366 = vunpack.c.0.s8 %v1365
        %v1367 = vlaneseq
        %v1368 = vshrl.u32 %v1367, 7
        %v1369 = vsub.s32 %v1366, %v1368
        %v1370 = vrot.slane %v1363, %v1369
        %v1372 = vunpack.c.l.s4 1966171168
        %v1373 = vunpack.c.0.s8 %v1372
        %v1374 = vlaneseq
        %v1375 = vshrl.u32 %v1374, 7
        %v1376 = vsub.s32 %v1373, %v1375
        %v1377 = vrot.slane %v1370, %v1376
        %v1378 = vcombine.low %v1349, %v1350
        %v1380 = vunpack.c.l.s4 1966171168
        %v1381 = vunpack.c.0.s8 %v1380
        %v1382 = vlaneseq
        %v1383 = vshrl.u32 %v1382, 7
        %v1384 = vsub.s32 %v1381, %v1383
        %v1385 = vrot.slane %v1378, %v1384
        %v1387 = vunpack.c.l.s4 1966171168
        %v1388 = vunpack.c.0.s8 %v1387
        %v1389 = vlaneseq
        %v1390 = vshrl.u32 %v1389, 7
        %v1391 = vsub.s32 %v1388, %v1390
        %v1392 = vrot.slane %v1385, %v1391
        %v1393 = vcombine.low %v1351, %v1352
        %v1395 = vunpack.c.l.s4 1966171168
        %v1396 = vunpack.c.0.s8 %v1395
        %v1397 = vlaneseq
        %v1398 = vshrl.u32 %v1397, 7
        %v1399 = vsub.s32 %v1396, %v1398
        %v1400 = vrot.slane %v1393, %v1399
        %v1402 = vunpack.c.l.s4 1966171168
        %v1403 = vunpack.c.0.s8 %v1402
        %v1404 = vlaneseq
        %v1405 = vshrl.u32 %v1404, 7
        %v1406 = vsub.s32 %v1403, %v1405
        %v1407 = vrot.slane %v1400, %v1406
        %v1408 = vcombine.low %v1353, %v1354
        %v1410 = vunpack.c.l.s4 1966171168
        %v1411 = vunpack.c.0.s8 %v1410
        %v1412 = vlaneseq
        %v1413 = vshrl.u32 %v1412, 7
        %v1414 = vsub.s32 %v1411, %v1413
        %v1415 = vrot.slane %v1408, %v1414
        %v1417 = vunpack.c.l.s4 1966171168
        %v1418 = vunpack.c.0.s8 %v1417
        %v1419 = vlaneseq
        %v1420 = vshrl.u32 %v1419, 7
        %v1421 = vsub.s32 %v1418, %v1420
        %v1422 = vrot.slane %v1415, %v1421
        %v1427 = vlaneseq
        %vm1428 = vcmp.ge.s32.totalorder %v1427, 0
        %vm1429 = vcmp.lt.s32.totalorder %v1427, 256
        %vm1430 = vmand %vm1428, %vm1429
        %1431 = vst.msk [vmem:[%s245] sm:$0x3] %vm1430, %v1377
        %1432 = vst.msk [vmem:[%s245 + $0x2] sm:$0x3] %vm1430, %v1392
        %1433 = vst.msk [vmem:[%s245 + $0x4] sm:$0x3] %vm1430, %v1407
        %1434 = vst.msk [vmem:[%s245 + $0x6] sm:$0x3] %vm1430, %v1422
        %s1435 = sand.u32 %s142, 1
        %s1436 = scalar_lea.sflag [#allocation5], %s1435
        %s1437 = sand.u32 %s142, 1
        %s1438 = smul.addr %s1437, 8
        %s1439 = scalar_lea.vmem [#allocation6], %s1438
        // Predicated region
        $region45: #{tpu_custom_call.1} parent=39 // pred_check
          %p1440 = pneg %p152
        $region46: #{tpu_custom_call.1} parent=39 // pred_check_branch
          %1442 = sbr.rel (%p1440) target = $region48
        $region47: #{tpu_custom_call.1} parent=39 // pred_region
          %s1443 = smul.u32 4, %s24
          %s1445 = ssub.s32 128, 128
          %1446 = vsyncadd %s1436, %s1445
          %s1447 = smul.addr %s1443, 2
          %s1448 = smul.addr %s1447, 16
          %s1449 = scalar_lea.hbm %s5, %s1448
          %s1450 = sshll.u32 %s1439, 4
          %s1451 = int_to_ptr.vmem [resolvable:$true] %s1450
          %1456 = dma.vmem_to_hbm [thread:$0]  %s1451, 128, %s1449, %s1436, 32, 32, 2
        $region48: #{tpu_custom_call.1} parent=39 // pred_fallthru
          _
      $region40: #{tpu_custom_call.1} parent=5 // pred_fallthru
        _
      %p1457 = scmp.le.s32.totalorder 2, %s19
      // Predicated region
      $region49: #{tpu_custom_call.1} parent=5 // pred_check
        %p1458 = pneg %p1457
      $region50: #{tpu_custom_call.1} parent=5 // pred_check_branch
        %1460 = sbr.rel (%p1458) target = $region52
      $region51: #{tpu_custom_call.1} parent=5 // pred_region
        %s1461 = ssub.s32 %s19, 2
        // Predicated region
        $region53: #{tpu_custom_call.1} parent=51 // pred_check
          %p1462 = pneg %p158
        $region54: #{tpu_custom_call.1} parent=51 // pred_check_branch
          %1464 = sbr.rel (%p1462) target = $region56
        $region55: #{tpu_custom_call.1} parent=51 // pred_region
          %s1465 = sand.u32 %s143, 1
          %s1466 = scalar_lea.sflag [#allocation5], %s1465
          %s1467 = sand.u32 %s143, 1
          %s1468 = smul.addr %s1467, 8
          %s1469 = scalar_lea.vmem [#allocation6], %s1468
          %1470 = dma.done %s1466, 128
        $region56: #{tpu_custom_call.1} parent=51 // pred_fallthru
          _
      $region52: #{tpu_custom_call.1} parent=5 // pred_fallthru
        _
    $region6: #{tpu_custom_call.1} parent=1 // loop_footer
      %s23 = sadd.s32 1, %s19
    $region7: #{tpu_custom_call.1} parent=1 // loop_footer_branch
      %18 = sbr.rel target = $region3
    $region8: #{tpu_custom_call.1} parent=1 // loop_exit
      _
    %1471 = vsyncpa [#allocation4], 1
    %s1472 = scalar_lea.sflag [#allocation4], 1
    %1473 = vsyncpa %s1472, 1
    %1474 = vsyncpa [#allocation5], 1
    %s1475 = scalar_lea.sflag [#allocation5], 1
    %1476 = vsyncpa %s1475, 1

</llo_original>
